<compile_context>
chip_gen: v6e
topology: v6e:2x2x1
jax: 0.10.0
libtpu: 0.0.40
codegen_flags: <defaults>
</compile_context>

<pallas_src>
import jax
import jax.numpy as jnp
from jax import lax
from jax.experimental import pallas as pl
from jax.experimental.pallas import tpu as pltpu

KH = KW = 3   # kernel_size
SH = SW = 3   # PyTorch MaxPool2d default stride == kernel_size


def _maxpool_kernel(x_ref, o_ref):
    bg, th, w = x_ref.shape           # (plane block, input rows, W)
    _, toh, ow = o_ref.shape          # (plane block, output rows, OW)

    # Constant 0/1 selection matrices: selw[kw][col, o] = 1 iff col == SW*o + kw.
    # A matmul with these gathers input column SW*o + kw into output column o
    # (a stride-3 gather along the lane axis done on the idle MXU).
    selw = []
    for kw in range(KW):
        col_idx = lax.broadcasted_iota(jnp.int32, (w, ow), 0)
        out_idx = lax.broadcasted_iota(jnp.int32, (w, ow), 1)
        selw.append((col_idx == SW * out_idx + kw).astype(jnp.float32))

    # TODO(synk): the selection-matmul gather is exact for finite inputs; a +/-inf
    # or NaN anywhere in an input row becomes NaN for that row's outputs (0 * inf),
    # so exact IEEE max-pool semantics for non-finite inputs are not preserved.

    for g in range(bg):               # static, small (<= plane_block) -> unrolled
        x = x_ref[g].astype(jnp.float32)                     # (TH, W)

        # ---- pool along W (lane axis): 3 selection matmuls + elementwise max ----
        wred = jnp.dot(x, selw[0], preferred_element_type=jnp.float32)
        for kw in range(1, KW):
            wred = jnp.maximum(
                wred, jnp.dot(x, selw[kw], preferred_element_type=jnp.float32))
        # wred: (TH, OW) -- each output column already reduced over its 3-wide window.

        # ---- pool along H (sublane axis): unit-stride 3-row slabs, all OW lanes ----
        rows = [
            jnp.max(wred[SH * t:SH * t + KH, :], axis=0, keepdims=True)
            for t in range(toh)
        ]
        out_plane = jnp.concatenate(rows, axis=0)            # (TOH, OW)

        # One lane/sublane-dense store per plane (no masked per-window stores).
        o_ref[g] = out_plane.astype(o_ref.dtype)


def maxpool2d_k3(x_nchw, *, plane_block=8, row_block=8):
    """MaxPool2d(kernel_size=3, stride=3, ceil_mode=False) on an NCHW tensor."""
    N, C, H, W = x_nchw.shape
    assert H >= KH and W >= KW, "input spatially smaller than the pooling window"
    OH = (H - KH) // SH + 1          # floor mode (ceil_mode=False)
    OW = (W - KW) // SW + 1
    G = N * C

    # Free reshape (merges leading dims only): no transpose / extra HBM traffic.
    x = x_nchw.reshape(G, H, W)

    bg = max(1, min(plane_block, G))

    if OH <= max(row_block, 8):
        # Small images: a single row-block covering the full height (block dims
        # equal the full array dims -> (8,128) rule trivially satisfied).
        toh, th, grid_h = OH, H, 1
    else:
        # Tile output rows in multiples of 8 so the sublane dims of both blocks
        # are 8-aligned; stride == kernel -> row blocks are non-overlapping
        # (no halo), and out-of-range rows of the last block are dropped.
        toh = max(8, (row_block // 8) * 8)
        th = toh * SH
        grid_h = pl.cdiv(OH, toh)

    grid = (pl.cdiv(G, bg), grid_h)

    out = pl.pallas_call(
        _maxpool_kernel,
        out_shape=jax.ShapeDtypeStruct((G, OH, OW), x_nchw.dtype),
        grid=grid,
        in_specs=[pl.BlockSpec((bg, th, W), lambda g, h: (g, h, 0))],
        out_specs=pl.BlockSpec((bg, toh, OW), lambda g, h: (g, h, 0)),
        compiler_params=pltpu.CompilerParams(
            dimension_semantics=("parallel", "parallel"),
            vmem_limit_bytes=32 * 1024 * 1024,
        ),
    )(x)

    return out.reshape(N, C, OH, OW)  # free reshape (splits leading dim back)


class Tudui:
    """JAX/Pallas equivalent of the PyTorch `Tudui` module (no parameters)."""

    def __call__(self, x):
        return maxpool2d_k3(x)


def _reference(x):
    # Floor-mode max pooling, kernel 3, stride 3 (matches torch.nn.MaxPool2d).
    return lax.reduce_window(
        x, -jnp.inf, lax.max,
        window_dimensions=(1, 1, KH, KW),
        window_strides=(1, 1, SH, SW),
        padding="VALID",
    )


if __name__ == "__main__":
    key = jax.random.PRNGKey(0)
    model = Tudui()

    # Primary small shape + extra shapes exercising the 5x5 spec case, the
    # 8-row tiled path, and the padded (non-dividing) boundary path.
    shapes = [(2, 4, 16, 16), (2, 1, 5, 5), (1, 2, 48, 32), (1, 3, 35, 20)]
    for i, shp in enumerate(shapes):
        x = jax.random.normal(jax.random.fold_in(key, i), shp, dtype=jnp.float32)
        out = jax.block_until_ready(model(x))
        ref = _reference(x)
        assert out.shape == ref.shape, (shp, out.shape, ref.shape)
        assert jnp.allclose(out, ref), f"mismatch vs. reduce_window for shape {shp}"

    assert model(jax.random.normal(key, (2, 4, 16, 16), jnp.float32)).shape == (2, 4, 5, 5)
    print("KERNEL_OK")
</pallas_src>

<mosaic_0001>
module attributes {stable_mosaic.version = 11 : i64} {
  func.func @_maxpool_kernel(%arg0: i32, %arg1: i32, %arg2: memref<8x16x16xf32, #tpu.memory_space<vmem>>, %arg3: memref<8x5x5xf32, #tpu.memory_space<vmem>>) attributes {dimension_semantics = [#tpu.dimension_semantics<parallel>, #tpu.dimension_semantics<parallel>], iteration_bounds = array<i64: 1, 1>, scalar_prefetch = 0 : i64, scratch_operands = 0 : i64, tpu.core_type = #tpu.core_type<tc>, window_params = [{transform_indices = @transform_0, window_bounds = array<i64: 8, 16, 16>}, {transform_indices = @transform_1, window_bounds = array<i64: 8, 5, 5>}]} {
    %0 = tpu.iota {dimensions = array<i32: 0>} : vector<16x5xi32>
    %1 = tpu.iota {dimensions = array<i32: 1>} : vector<16x5xi32>
    %c3_i32 = arith.constant 3 : i32
    %2 = vector.broadcast %c3_i32 : i32 to vector<16x5xi32>
    %3 = arith.muli %2, %1 : vector<16x5xi32>
    %c0_i32 = arith.constant 0 : i32
    %4 = vector.broadcast %c0_i32 : i32 to vector<16x5xi32>
    %5 = arith.addi %3, %4 : vector<16x5xi32>
    %6 = arith.cmpi eq, %0, %5 : vector<16x5xi32>
    %7 = arith.extui %6 : vector<16x5xi1> to vector<16x5xi32>
    %8 = arith.sitofp %7 : vector<16x5xi32> to vector<16x5xf32>
    %9 = tpu.iota {dimensions = array<i32: 0>} : vector<16x5xi32>
    %10 = tpu.iota {dimensions = array<i32: 1>} : vector<16x5xi32>
    %c3_i32_0 = arith.constant 3 : i32
    %11 = vector.broadcast %c3_i32_0 : i32 to vector<16x5xi32>
    %12 = arith.muli %11, %10 : vector<16x5xi32>
    %c1_i32 = arith.constant 1 : i32
    %13 = vector.broadcast %c1_i32 : i32 to vector<16x5xi32>
    %14 = arith.addi %12, %13 : vector<16x5xi32>
    %15 = arith.cmpi eq, %9, %14 : vector<16x5xi32>
    %16 = arith.extui %15 : vector<16x5xi1> to vector<16x5xi32>
    %17 = arith.sitofp %16 : vector<16x5xi32> to vector<16x5xf32>
    %18 = tpu.iota {dimensions = array<i32: 0>} : vector<16x5xi32>
    %19 = tpu.iota {dimensions = array<i32: 1>} : vector<16x5xi32>
    %c3_i32_1 = arith.constant 3 : i32
    %20 = vector.broadcast %c3_i32_1 : i32 to vector<16x5xi32>
    %21 = arith.muli %20, %19 : vector<16x5xi32>
    %c2_i32 = arith.constant 2 : i32
    %22 = vector.broadcast %c2_i32 : i32 to vector<16x5xi32>
    %23 = arith.addi %21, %22 : vector<16x5xi32>
    %24 = arith.cmpi eq, %18, %23 : vector<16x5xi32>
    %25 = arith.extui %24 : vector<16x5xi1> to vector<16x5xi32>
    %26 = arith.sitofp %25 : vector<16x5xi32> to vector<16x5xf32>
    %c0 = arith.constant 0 : index
    %c0_2 = arith.constant 0 : index
    %c0_3 = arith.constant 0 : index
    %27 = vector.load %arg2[%c0, %c0_2, %c0_3] : memref<8x16x16xf32, #tpu.memory_space<vmem>>, vector<1x16x16xf32>
    %28 = vector.shape_cast %27 : vector<1x16x16xf32> to vector<16x16xf32>
    %cst = arith.constant dense<0.000000e+00> : vector<16x5xf32>
    %29 = tpu.matmul %28, %8, %cst {dimension_numbers = #tpu.dot_dimension_numbers<[1], [0], [0], [1], [0, 0, 1, 1], [], []>} : vector<16x16xf32>, vector<16x5xf32>, vector<16x5xf32> -> vector<16x5xf32>
    %cst_4 = arith.constant dense<0.000000e+00> : vector<16x5xf32>
    %30 = tpu.matmul %28, %17, %cst_4 {dimension_numbers = #tpu.dot_dimension_numbers<[1], [0], [0], [1], [0, 0, 1, 1], [], []>} : vector<16x16xf32>, vector<16x5xf32>, vector<16x5xf32> -> vector<16x5xf32>
    %31 = arith.maximumf %29, %30 : vector<16x5xf32>
    %cst_5 = arith.constant dense<0.000000e+00> : vector<16x5xf32>
    %32 = tpu.matmul %28, %26, %cst_5 {dimension_numbers = #tpu.dot_dimension_numbers<[1], [0], [0], [1], [0, 0, 1, 1], [], []>} : vector<16x16xf32>, vector<16x5xf32>, vector<16x5xf32> -> vector<16x5xf32>
    %33 = arith.maximumf %31, %32 : vector<16x5xf32>
    %34 = vector.extract_strided_slice %33 {offsets = [0, 0], sizes = [3, 5], strides = [1, 1]} : vector<16x5xf32> to vector<3x5xf32>
    %cst_6 = arith.constant dense<0xFF800000> : vector<5xf32>
    %35 = vector.multi_reduction <maximumf>, %34, %cst_6 [0] : vector<3x5xf32> to vector<5xf32>
    %36 = vector.shape_cast %35 : vector<5xf32> to vector<1x5xf32>
    %37 = vector.extract_strided_slice %33 {offsets = [3, 0], sizes = [3, 5], strides = [1, 1]} : vector<16x5xf32> to vector<3x5xf32>
    %cst_7 = arith.constant dense<0xFF800000> : vector<5xf32>
    %38 = vector.multi_reduction <maximumf>, %37, %cst_7 [0] : vector<3x5xf32> to vector<5xf32>
    %39 = vector.shape_cast %38 : vector<5xf32> to vector<1x5xf32>
    %40 = vector.extract_strided_slice %33 {offsets = [6, 0], sizes = [3, 5], strides = [1, 1]} : vector<16x5xf32> to vector<3x5xf32>
    %cst_8 = arith.constant dense<0xFF800000> : vector<5xf32>
    %41 = vector.multi_reduction <maximumf>, %40, %cst_8 [0] : vector<3x5xf32> to vector<5xf32>
    %42 = vector.shape_cast %41 : vector<5xf32> to vector<1x5xf32>
    %43 = vector.extract_strided_slice %33 {offsets = [9, 0], sizes = [3, 5], strides = [1, 1]} : vector<16x5xf32> to vector<3x5xf32>
    %cst_9 = arith.constant dense<0xFF800000> : vector<5xf32>
    %44 = vector.multi_reduction <maximumf>, %43, %cst_9 [0] : vector<3x5xf32> to vector<5xf32>
    %45 = vector.shape_cast %44 : vector<5xf32> to vector<1x5xf32>
    %46 = vector.extract_strided_slice %33 {offsets = [12, 0], sizes = [3, 5], strides = [1, 1]} : vector<16x5xf32> to vector<3x5xf32>
    %cst_10 = arith.constant dense<0xFF800000> : vector<5xf32>
    %47 = vector.multi_reduction <maximumf>, %46, %cst_10 [0] : vector<3x5xf32> to vector<5xf32>
    %48 = vector.shape_cast %47 : vector<5xf32> to vector<1x5xf32>
    %49 = tpu.concatenate %36, %39, %42, %45, %48 in 0 : vector<1x5xf32>, vector<1x5xf32>, vector<1x5xf32>, vector<1x5xf32>, vector<1x5xf32> -> vector<5x5xf32>
    %c0_11 = arith.constant 0 : index
    %c0_12 = arith.constant 0 : index
    %c0_13 = arith.constant 0 : index
    %50 = vector.load %arg3[%c0_11, %c0_12, %c0_13] : memref<8x5x5xf32, #tpu.memory_space<vmem>>, vector<1x5x5xf32>
    %51 = vector.shape_cast %50 : vector<1x5x5xf32> to vector<5x5xf32>
    %52 = vector.shape_cast %49 : vector<5x5xf32> to vector<1x5x5xf32>
    tpu.vector_store %arg3[%c0_11, %c0_12, %c0_13], %52 {strides = array<i32>} : memref<8x5x5xf32, #tpu.memory_space<vmem>>, vector<1x5x5xf32>,
    %c1 = arith.constant 1 : index
    %c0_14 = arith.constant 0 : index
    %c0_15 = arith.constant 0 : index
    %53 = vector.load %arg2[%c1, %c0_14, %c0_15] : memref<8x16x16xf32, #tpu.memory_space<vmem>>, vector<1x16x16xf32>
    %54 = vector.shape_cast %53 : vector<1x16x16xf32> to vector<16x16xf32>
    %cst_16 = arith.constant dense<0.000000e+00> : vector<16x5xf32>
    %55 = tpu.matmul %54, %8, %cst_16 {dimension_numbers = #tpu.dot_dimension_numbers<[1], [0], [0], [1], [0, 0, 1, 1], [], []>} : vector<16x16xf32>, vector<16x5xf32>, vector<16x5xf32> -> vector<16x5xf32>
    %cst_17 = arith.constant dense<0.000000e+00> : vector<16x5xf32>
    %56 = tpu.matmul %54, %17, %cst_17 {dimension_numbers = #tpu.dot_dimension_numbers<[1], [0], [0], [1], [0, 0, 1, 1], [], []>} : vector<16x16xf32>, vector<16x5xf32>, vector<16x5xf32> -> vector<16x5xf32>
    %57 = arith.maximumf %55, %56 : vector<16x5xf32>
    %cst_18 = arith.constant dense<0.000000e+00> : vector<16x5xf32>
    %58 = tpu.matmul %54, %26, %cst_18 {dimension_numbers = #tpu.dot_dimension_numbers<[1], [0], [0], [1], [0, 0, 1, 1], [], []>} : vector<16x16xf32>, vector<16x5xf32>, vector<16x5xf32> -> vector<16x5xf32>
    %59 = arith.maximumf %57, %58 : vector<16x5xf32>
    %60 = vector.extract_strided_slice %59 {offsets = [0, 0], sizes = [3, 5], strides = [1, 1]} : vector<16x5xf32> to vector<3x5xf32>
    %cst_19 = arith.constant dense<0xFF800000> : vector<5xf32>
    %61 = vector.multi_reduction <maximumf>, %60, %cst_19 [0] : vector<3x5xf32> to vector<5xf32>
    %62 = vector.shape_cast %61 : vector<5xf32> to vector<1x5xf32>
    %63 = vector.extract_strided_slice %59 {offsets = [3, 0], sizes = [3, 5], strides = [1, 1]} : vector<16x5xf32> to vector<3x5xf32>
    %cst_20 = arith.constant dense<0xFF800000> : vector<5xf32>
    %64 = vector.multi_reduction <maximumf>, %63, %cst_20 [0] : vector<3x5xf32> to vector<5xf32>
    %65 = vector.shape_cast %64 : vector<5xf32> to vector<1x5xf32>
    %66 = vector.extract_strided_slice %59 {offsets = [6, 0], sizes = [3, 5], strides = [1, 1]} : vector<16x5xf32> to vector<3x5xf32>
    %cst_21 = arith.constant dense<0xFF800000> : vector<5xf32>
    %67 = vector.multi_reduction <maximumf>, %66, %cst_21 [0] : vector<3x5xf32> to vector<5xf32>
    %68 = vector.shape_cast %67 : vector<5xf32> to vector<1x5xf32>
    %69 = vector.extract_strided_slice %59 {offsets = [9, 0], sizes = [3, 5], strides = [1, 1]} : vector<16x5xf32> to vector<3x5xf32>
    %cst_22 = arith.constant dense<0xFF800000> : vector<5xf32>
    %70 = vector.multi_reduction <maximumf>, %69, %cst_22 [0] : vector<3x5xf32> to vector<5xf32>
    %71 = vector.shape_cast %70 : vector<5xf32> to vector<1x5xf32>
    %72 = vector.extract_strided_slice %59 {offsets = [12, 0], sizes = [3, 5], strides = [1, 1]} : vector<16x5xf32> to vector<3x5xf32>
    %cst_23 = arith.constant dense<0xFF800000> : vector<5xf32>
    %73 = vector.multi_reduction <maximumf>, %72, %cst_23 [0] : vector<3x5xf32> to vector<5xf32>
    %74 = vector.shape_cast %73 : vector<5xf32> to vector<1x5xf32>
    %75 = tpu.concatenate %62, %65, %68, %71, %74 in 0 : vector<1x5xf32>, vector<1x5xf32>, vector<1x5xf32>, vector<1x5xf32>, vector<1x5xf32> -> vector<5x5xf32>
    %c1_24 = arith.constant 1 : index
    %c0_25 = arith.constant 0 : index
    %c0_26 = arith.constant 0 : index
    %76 = vector.load %arg3[%c1_24, %c0_25, %c0_26] : memref<8x5x5xf32, #tpu.memory_space<vmem>>, vector<1x5x5xf32>
    %77 = vector.shape_cast %76 : vector<1x5x5xf32> to vector<5x5xf32>
    %78 = vector.shape_cast %75 : vector<5x5xf32> to vector<1x5x5xf32>
    tpu.vector_store %arg3[%c1_24, %c0_25, %c0_26], %78 {strides = array<i32>} : memref<8x5x5xf32, #tpu.memory_space<vmem>>, vector<1x5x5xf32>,
    %c2 = arith.constant 2 : index
    %c0_27 = arith.constant 0 : index
    %c0_28 = arith.constant 0 : index
    %79 = vector.load %arg2[%c2, %c0_27, %c0_28] : memref<8x16x16xf32, #tpu.memory_space<vmem>>, vector<1x16x16xf32>
    %80 = vector.shape_cast %79 : vector<1x16x16xf32> to vector<16x16xf32>
    %cst_29 = arith.constant dense<0.000000e+00> : vector<16x5xf32>
    %81 = tpu.matmul %80, %8, %cst_29 {dimension_numbers = #tpu.dot_dimension_numbers<[1], [0], [0], [1], [0, 0, 1, 1], [], []>} : vector<16x16xf32>, vector<16x5xf32>, vector<16x5xf32> -> vector<16x5xf32>
    %cst_30 = arith.constant dense<0.000000e+00> : vector<16x5xf32>
    %82 = tpu.matmul %80, %17, %cst_30 {dimension_numbers = #tpu.dot_dimension_numbers<[1], [0], [0], [1], [0, 0, 1, 1], [], []>} : vector<16x16xf32>, vector<16x5xf32>, vector<16x5xf32> -> vector<16x5xf32>
    %83 = arith.maximumf %81, %82 : vector<16x5xf32>
    %cst_31 = arith.constant dense<0.000000e+00> : vector<16x5xf32>
    %84 = tpu.matmul %80, %26, %cst_31 {dimension_numbers = #tpu.dot_dimension_numbers<[1], [0], [0], [1], [0, 0, 1, 1], [], []>} : vector<16x16xf32>, vector<16x5xf32>, vector<16x5xf32> -> vector<16x5xf32>
    %85 = arith.maximumf %83, %84 : vector<16x5xf32>
    %86 = vector.extract_strided_slice %85 {offsets = [0, 0], sizes = [3, 5], strides = [1, 1]} : vector<16x5xf32> to vector<3x5xf32>
    %cst_32 = arith.constant dense<0xFF800000> : vector<5xf32>
    %87 = vector.multi_reduction <maximumf>, %86, %cst_32 [0] : vector<3x5xf32> to vector<5xf32>
    %88 = vector.shape_cast %87 : vector<5xf32> to vector<1x5xf32>
    %89 = vector.extract_strided_slice %85 {offsets = [3, 0], sizes = [3, 5], strides = [1, 1]} : vector<16x5xf32> to vector<3x5xf32>
    %cst_33 = arith.constant dense<0xFF800000> : vector<5xf32>
    %90 = vector.multi_reduction <maximumf>, %89, %cst_33 [0] : vector<3x5xf32> to vector<5xf32>
    %91 = vector.shape_cast %90 : vector<5xf32> to vector<1x5xf32>
    %92 = vector.extract_strided_slice %85 {offsets = [6, 0], sizes = [3, 5], strides = [1, 1]} : vector<16x5xf32> to vector<3x5xf32>
    %cst_34 = arith.constant dense<0xFF800000> : vector<5xf32>
    %93 = vector.multi_reduction <maximumf>, %92, %cst_34 [0] : vector<3x5xf32> to vector<5xf32>
    %94 = vector.shape_cast %93 : vector<5xf32> to vector<1x5xf32>
    %95 = vector.extract_strided_slice %85 {offsets = [9, 0], sizes = [3, 5], strides = [1, 1]} : vector<16x5xf32> to vector<3x5xf32>
    %cst_35 = arith.constant dense<0xFF800000> : vector<5xf32>
    %96 = vector.multi_reduction <maximumf>, %95, %cst_35 [0] : vector<3x5xf32> to vector<5xf32>
    %97 = vector.shape_cast %96 : vector<5xf32> to vector<1x5xf32>
    %98 = vector.extract_strided_slice %85 {offsets = [12, 0], sizes = [3, 5], strides = [1, 1]} : vector<16x5xf32> to vector<3x5xf32>
    %cst_36 = arith.constant dense<0xFF800000> : vector<5xf32>
    %99 = vector.multi_reduction <maximumf>, %98, %cst_36 [0] : vector<3x5xf32> to vector<5xf32>
    %100 = vector.shape_cast %99 : vector<5xf32> to vector<1x5xf32>
    %101 = tpu.concatenate %88, %91, %94, %97, %100 in 0 : vector<1x5xf32>, vector<1x5xf32>, vector<1x5xf32>, vector<1x5xf32>, vector<1x5xf32> -> vector<5x5xf32>
    %c2_37 = arith.constant 2 : index
    %c0_38 = arith.constant 0 : index
    %c0_39 = arith.constant 0 : index
    %102 = vector.load %arg3[%c2_37, %c0_38, %c0_39] : memref<8x5x5xf32, #tpu.memory_space<vmem>>, vector<1x5x5xf32>
    %103 = vector.shape_cast %102 : vector<1x5x5xf32> to vector<5x5xf32>
    %104 = vector.shape_cast %101 : vector<5x5xf32> to vector<1x5x5xf32>
    tpu.vector_store %arg3[%c2_37, %c0_38, %c0_39], %104 {strides = array<i32>} : memref<8x5x5xf32, #tpu.memory_space<vmem>>, vector<1x5x5xf32>,
    %c3 = arith.constant 3 : index
    %c0_40 = arith.constant 0 : index
    %c0_41 = arith.constant 0 : index
    %105 = vector.load %arg2[%c3, %c0_40, %c0_41] : memref<8x16x16xf32, #tpu.memory_space<vmem>>, vector<1x16x16xf32>
    %106 = vector.shape_cast %105 : vector<1x16x16xf32> to vector<16x16xf32>
    %cst_42 = arith.constant dense<0.000000e+00> : vector<16x5xf32>
    %107 = tpu.matmul %106, %8, %cst_42 {dimension_numbers = #tpu.dot_dimension_numbers<[1], [0], [0], [1], [0, 0, 1, 1], [], []>} : vector<16x16xf32>, vector<16x5xf32>, vector<16x5xf32> -> vector<16x5xf32>
    %cst_43 = arith.constant dense<0.000000e+00> : vector<16x5xf32>
    %108 = tpu.matmul %106, %17, %cst_43 {dimension_numbers = #tpu.dot_dimension_numbers<[1], [0], [0], [1], [0, 0, 1, 1], [], []>} : vector<16x16xf32>, vector<16x5xf32>, vector<16x5xf32> -> vector<16x5xf32>
    %109 = arith.maximumf %107, %108 : vector<16x5xf32>
    %cst_44 = arith.constant dense<0.000000e+00> : vector<16x5xf32>
    %110 = tpu.matmul %106, %26, %cst_44 {dimension_numbers = #tpu.dot_dimension_numbers<[1], [0], [0], [1], [0, 0, 1, 1], [], []>} : vector<16x16xf32>, vector<16x5xf32>, vector<16x5xf32> -> vector<16x5xf32>
    %111 = arith.maximumf %109, %110 : vector<16x5xf32>
    %112 = vector.extract_strided_slice %111 {offsets = [0, 0], sizes = [3, 5], strides = [1, 1]} : vector<16x5xf32> to vector<3x5xf32>
    %cst_45 = arith.constant dense<0xFF800000> : vector<5xf32>
    %113 = vector.multi_reduction <maximumf>, %112, %cst_45 [0] : vector<3x5xf32> to vector<5xf32>
    %114 = vector.shape_cast %113 : vector<5xf32> to vector<1x5xf32>
    %115 = vector.extract_strided_slice %111 {offsets = [3, 0], sizes = [3, 5], strides = [1, 1]} : vector<16x5xf32> to vector<3x5xf32>
    %cst_46 = arith.constant dense<0xFF800000> : vector<5xf32>
    %116 = vector.multi_reduction <maximumf>, %115, %cst_46 [0] : vector<3x5xf32> to vector<5xf32>
    %117 = vector.shape_cast %116 : vector<5xf32> to vector<1x5xf32>
    %118 = vector.extract_strided_slice %111 {offsets = [6, 0], sizes = [3, 5], strides = [1, 1]} : vector<16x5xf32> to vector<3x5xf32>
    %cst_47 = arith.constant dense<0xFF800000> : vector<5xf32>
    %119 = vector.multi_reduction <maximumf>, %118, %cst_47 [0] : vector<3x5xf32> to vector<5xf32>
    %120 = vector.shape_cast %119 : vector<5xf32> to vector<1x5xf32>
    %121 = vector.extract_strided_slice %111 {offsets = [9, 0], sizes = [3, 5], strides = [1, 1]} : vector<16x5xf32> to vector<3x5xf32>
    %cst_48 = arith.constant dense<0xFF800000> : vector<5xf32>
    %122 = vector.multi_reduction <maximumf>, %121, %cst_48 [0] : vector<3x5xf32> to vector<5xf32>
    %123 = vector.shape_cast %122 : vector<5xf32> to vector<1x5xf32>
    %124 = vector.extract_strided_slice %111 {offsets = [12, 0], sizes = [3, 5], strides = [1, 1]} : vector<16x5xf32> to vector<3x5xf32>
    %cst_49 = arith.constant dense<0xFF800000> : vector<5xf32>
    %125 = vector.multi_reduction <maximumf>, %124, %cst_49 [0] : vector<3x5xf32> to vector<5xf32>
    %126 = vector.shape_cast %125 : vector<5xf32> to vector<1x5xf32>
    %127 = tpu.concatenate %114, %117, %120, %123, %126 in 0 : vector<1x5xf32>, vector<1x5xf32>, vector<1x5xf32>, vector<1x5xf32>, vector<1x5xf32> -> vector<5x5xf32>
    %c3_50 = arith.constant 3 : index
    %c0_51 = arith.constant 0 : index
    %c0_52 = arith.constant 0 : index
    %128 = vector.load %arg3[%c3_50, %c0_51, %c0_52] : memref<8x5x5xf32, #tpu.memory_space<vmem>>, vector<1x5x5xf32>
    %129 = vector.shape_cast %128 : vector<1x5x5xf32> to vector<5x5xf32>
    %130 = vector.shape_cast %127 : vector<5x5xf32> to vector<1x5x5xf32>
    tpu.vector_store %arg3[%c3_50, %c0_51, %c0_52], %130 {strides = array<i32>} : memref<8x5x5xf32, #tpu.memory_space<vmem>>, vector<1x5x5xf32>,
    %c4 = arith.constant 4 : index
    %c0_53 = arith.constant 0 : index
    %c0_54 = arith.constant 0 : index
    %131 = vector.load %arg2[%c4, %c0_53, %c0_54] : memref<8x16x16xf32, #tpu.memory_space<vmem>>, vector<1x16x16xf32>
    %132 = vector.shape_cast %131 : vector<1x16x16xf32> to vector<16x16xf32>
    %cst_55 = arith.constant dense<0.000000e+00> : vector<16x5xf32>
    %133 = tpu.matmul %132, %8, %cst_55 {dimension_numbers = #tpu.dot_dimension_numbers<[1], [0], [0], [1], [0, 0, 1, 1], [], []>} : vector<16x16xf32>, vector<16x5xf32>, vector<16x5xf32> -> vector<16x5xf32>
    %cst_56 = arith.constant dense<0.000000e+00> : vector<16x5xf32>
    %134 = tpu.matmul %132, %17, %cst_56 {dimension_numbers = #tpu.dot_dimension_numbers<[1], [0], [0], [1], [0, 0, 1, 1], [], []>} : vector<16x16xf32>, vector<16x5xf32>, vector<16x5xf32> -> vector<16x5xf32>
    %135 = arith.maximumf %133, %134 : vector<16x5xf32>
    %cst_57 = arith.constant dense<0.000000e+00> : vector<16x5xf32>
    %136 = tpu.matmul %132, %26, %cst_57 {dimension_numbers = #tpu.dot_dimension_numbers<[1], [0], [0], [1], [0, 0, 1, 1], [], []>} : vector<16x16xf32>, vector<16x5xf32>, vector<16x5xf32> -> vector<16x5xf32>
    %137 = arith.maximumf %135, %136 : vector<16x5xf32>
    %138 = vector.extract_strided_slice %137 {offsets = [0, 0], sizes = [3, 5], strides = [1, 1]} : vector<16x5xf32> to vector<3x5xf32>
    %cst_58 = arith.constant dense<0xFF800000> : vector<5xf32>
    %139 = vector.multi_reduction <maximumf>, %138, %cst_58 [0] : vector<3x5xf32> to vector<5xf32>
    %140 = vector.shape_cast %139 : vector<5xf32> to vector<1x5xf32>
    %141 = vector.extract_strided_slice %137 {offsets = [3, 0], sizes = [3, 5], strides = [1, 1]} : vector<16x5xf32> to vector<3x5xf32>
    %cst_59 = arith.constant dense<0xFF800000> : vector<5xf32>
    %142 = vector.multi_reduction <maximumf>, %141, %cst_59 [0] : vector<3x5xf32> to vector<5xf32>
    %143 = vector.shape_cast %142 : vector<5xf32> to vector<1x5xf32>
    %144 = vector.extract_strided_slice %137 {offsets = [6, 0], sizes = [3, 5], strides = [1, 1]} : vector<16x5xf32> to vector<3x5xf32>
    %cst_60 = arith.constant dense<0xFF800000> : vector<5xf32>
    %145 = vector.multi_reduction <maximumf>, %144, %cst_60 [0] : vector<3x5xf32> to vector<5xf32>
    %146 = vector.shape_cast %145 : vector<5xf32> to vector<1x5xf32>
    %147 = vector.extract_strided_slice %137 {offsets = [9, 0], sizes = [3, 5], strides = [1, 1]} : vector<16x5xf32> to vector<3x5xf32>
    %cst_61 = arith.constant dense<0xFF800000> : vector<5xf32>
    %148 = vector.multi_reduction <maximumf>, %147, %cst_61 [0] : vector<3x5xf32> to vector<5xf32>
    %149 = vector.shape_cast %148 : vector<5xf32> to vector<1x5xf32>
    %150 = vector.extract_strided_slice %137 {offsets = [12, 0], sizes = [3, 5], strides = [1, 1]} : vector<16x5xf32> to vector<3x5xf32>
    %cst_62 = arith.constant dense<0xFF800000> : vector<5xf32>
    %151 = vector.multi_reduction <maximumf>, %150, %cst_62 [0] : vector<3x5xf32> to vector<5xf32>
    %152 = vector.shape_cast %151 : vector<5xf32> to vector<1x5xf32>
    %153 = tpu.concatenate %140, %143, %146, %149, %152 in 0 : vector<1x5xf32>, vector<1x5xf32>, vector<1x5xf32>, vector<1x5xf32>, vector<1x5xf32> -> vector<5x5xf32>
    %c4_63 = arith.constant 4 : index
    %c0_64 = arith.constant 0 : index
    %c0_65 = arith.constant 0 : index
    %154 = vector.load %arg3[%c4_63, %c0_64, %c0_65] : memref<8x5x5xf32, #tpu.memory_space<vmem>>, vector<1x5x5xf32>
    %155 = vector.shape_cast %154 : vector<1x5x5xf32> to vector<5x5xf32>
    %156 = vector.shape_cast %153 : vector<5x5xf32> to vector<1x5x5xf32>
    tpu.vector_store %arg3[%c4_63, %c0_64, %c0_65], %156 {strides = array<i32>} : memref<8x5x5xf32, #tpu.memory_space<vmem>>, vector<1x5x5xf32>,
    %c5 = arith.constant 5 : index
    %c0_66 = arith.constant 0 : index
    %c0_67 = arith.constant 0 : index
    %157 = vector.load %arg2[%c5, %c0_66, %c0_67] : memref<8x16x16xf32, #tpu.memory_space<vmem>>, vector<1x16x16xf32>
    %158 = vector.shape_cast %157 : vector<1x16x16xf32> to vector<16x16xf32>
    %cst_68 = arith.constant dense<0.000000e+00> : vector<16x5xf32>
    %159 = tpu.matmul %158, %8, %cst_68 {dimension_numbers = #tpu.dot_dimension_numbers<[1], [0], [0], [1], [0, 0, 1, 1], [], []>} : vector<16x16xf32>, vector<16x5xf32>, vector<16x5xf32> -> vector<16x5xf32>
    %cst_69 = arith.constant dense<0.000000e+00> : vector<16x5xf32>
    %160 = tpu.matmul %158, %17, %cst_69 {dimension_numbers = #tpu.dot_dimension_numbers<[1], [0], [0], [1], [0, 0, 1, 1], [], []>} : vector<16x16xf32>, vector<16x5xf32>, vector<16x5xf32> -> vector<16x5xf32>
    %161 = arith.maximumf %159, %160 : vector<16x5xf32>
    %cst_70 = arith.constant dense<0.000000e+00> : vector<16x5xf32>
    %162 = tpu.matmul %158, %26, %cst_70 {dimension_numbers = #tpu.dot_dimension_numbers<[1], [0], [0], [1], [0, 0, 1, 1], [], []>} : vector<16x16xf32>, vector<16x5xf32>, vector<16x5xf32> -> vector<16x5xf32>
    %163 = arith.maximumf %161, %162 : vector<16x5xf32>
    %164 = vector.extract_strided_slice %163 {offsets = [0, 0], sizes = [3, 5], strides = [1, 1]} : vector<16x5xf32> to vector<3x5xf32>
    %cst_71 = arith.constant dense<0xFF800000> : vector<5xf32>
    %165 = vector.multi_reduction <maximumf>, %164, %cst_71 [0] : vector<3x5xf32> to vector<5xf32>
    %166 = vector.shape_cast %165 : vector<5xf32> to vector<1x5xf32>
    %167 = vector.extract_strided_slice %163 {offsets = [3, 0], sizes = [3, 5], strides = [1, 1]} : vector<16x5xf32> to vector<3x5xf32>
    %cst_72 = arith.constant dense<0xFF800000> : vector<5xf32>
    %168 = vector.multi_reduction <maximumf>, %167, %cst_72 [0] : vector<3x5xf32> to vector<5xf32>
    %169 = vector.shape_cast %168 : vector<5xf32> to vector<1x5xf32>
    %170 = vector.extract_strided_slice %163 {offsets = [6, 0], sizes = [3, 5], strides = [1, 1]} : vector<16x5xf32> to vector<3x5xf32>
    %cst_73 = arith.constant dense<0xFF800000> : vector<5xf32>
    %171 = vector.multi_reduction <maximumf>, %170, %cst_73 [0] : vector<3x5xf32> to vector<5xf32>
    %172 = vector.shape_cast %171 : vector<5xf32> to vector<1x5xf32>
    %173 = vector.extract_strided_slice %163 {offsets = [9, 0], sizes = [3, 5], strides = [1, 1]} : vector<16x5xf32> to vector<3x5xf32>
    %cst_74 = arith.constant dense<0xFF800000> : vector<5xf32>
    %174 = vector.multi_reduction <maximumf>, %173, %cst_74 [0] : vector<3x5xf32> to vector<5xf32>
    %175 = vector.shape_cast %174 : vector<5xf32> to vector<1x5xf32>
    %176 = vector.extract_strided_slice %163 {offsets = [12, 0], sizes = [3, 5], strides = [1, 1]} : vector<16x5xf32> to vector<3x5xf32>
    %cst_75 = arith.constant dense<0xFF800000> : vector<5xf32>
    %177 = vector.multi_reduction <maximumf>, %176, %cst_75 [0] : vector<3x5xf32> to vector<5xf32>
    %178 = vector.shape_cast %177 : vector<5xf32> to vector<1x5xf32>
    %179 = tpu.concatenate %166, %169, %172, %175, %178 in 0 : vector<1x5xf32>, vector<1x5xf32>, vector<1x5xf32>, vector<1x5xf32>, vector<1x5xf32> -> vector<5x5xf32>
    %c5_76 = arith.constant 5 : index
    %c0_77 = arith.constant 0 : index
    %c0_78 = arith.constant 0 : index
    %180 = vector.load %arg3[%c5_76, %c0_77, %c0_78] : memref<8x5x5xf32, #tpu.memory_space<vmem>>, vector<1x5x5xf32>
    %181 = vector.shape_cast %180 : vector<1x5x5xf32> to vector<5x5xf32>
    %182 = vector.shape_cast %179 : vector<5x5xf32> to vector<1x5x5xf32>
    tpu.vector_store %arg3[%c5_76, %c0_77, %c0_78], %182 {strides = array<i32>} : memref<8x5x5xf32, #tpu.memory_space<vmem>>, vector<1x5x5xf32>,
    %c6 = arith.constant 6 : index
    %c0_79 = arith.constant 0 : index
    %c0_80 = arith.constant 0 : index
    %183 = vector.load %arg2[%c6, %c0_79, %c0_80] : memref<8x16x16xf32, #tpu.memory_space<vmem>>, vector<1x16x16xf32>
    %184 = vector.shape_cast %183 : vector<1x16x16xf32> to vector<16x16xf32>
    %cst_81 = arith.constant dense<0.000000e+00> : vector<16x5xf32>
    %185 = tpu.matmul %184, %8, %cst_81 {dimension_numbers = #tpu.dot_dimension_numbers<[1], [0], [0], [1], [0, 0, 1, 1], [], []>} : vector<16x16xf32>, vector<16x5xf32>, vector<16x5xf32> -> vector<16x5xf32>
    %cst_82 = arith.constant dense<0.000000e+00> : vector<16x5xf32>
    %186 = tpu.matmul %184, %17, %cst_82 {dimension_numbers = #tpu.dot_dimension_numbers<[1], [0], [0], [1], [0, 0, 1, 1], [], []>} : vector<16x16xf32>, vector<16x5xf32>, vector<16x5xf32> -> vector<16x5xf32>
    %187 = arith.maximumf %185, %186 : vector<16x5xf32>
    %cst_83 = arith.constant dense<0.000000e+00> : vector<16x5xf32>
    %188 = tpu.matmul %184, %26, %cst_83 {dimension_numbers = #tpu.dot_dimension_numbers<[1], [0], [0], [1], [0, 0, 1, 1], [], []>} : vector<16x16xf32>, vector<16x5xf32>, vector<16x5xf32> -> vector<16x5xf32>
    %189 = arith.maximumf %187, %188 : vector<16x5xf32>
    %190 = vector.extract_strided_slice %189 {offsets = [0, 0], sizes = [3, 5], strides = [1, 1]} : vector<16x5xf32> to vector<3x5xf32>
    %cst_84 = arith.constant dense<0xFF800000> : vector<5xf32>
    %191 = vector.multi_reduction <maximumf>, %190, %cst_84 [0] : vector<3x5xf32> to vector<5xf32>
    %192 = vector.shape_cast %191 : vector<5xf32> to vector<1x5xf32>
    %193 = vector.extract_strided_slice %189 {offsets = [3, 0], sizes = [3, 5], strides = [1, 1]} : vector<16x5xf32> to vector<3x5xf32>
    %cst_85 = arith.constant dense<0xFF800000> : vector<5xf32>
    %194 = vector.multi_reduction <maximumf>, %193, %cst_85 [0] : vector<3x5xf32> to vector<5xf32>
    %195 = vector.shape_cast %194 : vector<5xf32> to vector<1x5xf32>
    %196 = vector.extract_strided_slice %189 {offsets = [6, 0], sizes = [3, 5], strides = [1, 1]} : vector<16x5xf32> to vector<3x5xf32>
    %cst_86 = arith.constant dense<0xFF800000> : vector<5xf32>
    %197 = vector.multi_reduction <maximumf>, %196, %cst_86 [0] : vector<3x5xf32> to vector<5xf32>
    %198 = vector.shape_cast %197 : vector<5xf32> to vector<1x5xf32>
    %199 = vector.extract_strided_slice %189 {offsets = [9, 0], sizes = [3, 5], strides = [1, 1]} : vector<16x5xf32> to vector<3x5xf32>
    %cst_87 = arith.constant dense<0xFF800000> : vector<5xf32>
    %200 = vector.multi_reduction <maximumf>, %199, %cst_87 [0] : vector<3x5xf32> to vector<5xf32>
    %201 = vector.shape_cast %200 : vector<5xf32> to vector<1x5xf32>
    %202 = vector.extract_strided_slice %189 {offsets = [12, 0], sizes = [3, 5], strides = [1, 1]} : vector<16x5xf32> to vector<3x5xf32>
    %cst_88 = arith.constant dense<0xFF800000> : vector<5xf32>
    %203 = vector.multi_reduction <maximumf>, %202, %cst_88 [0] : vector<3x5xf32> to vector<5xf32>
    %204 = vector.shape_cast %203 : vector<5xf32> to vector<1x5xf32>
    %205 = tpu.concatenate %192, %195, %198, %201, %204 in 0 : vector<1x5xf32>, vector<1x5xf32>, vector<1x5xf32>, vector<1x5xf32>, vector<1x5xf32> -> vector<5x5xf32>
    %c6_89 = arith.constant 6 : index
    %c0_90 = arith.constant 0 : index
    %c0_91 = arith.constant 0 : index
    %206 = vector.load %arg3[%c6_89, %c0_90, %c0_91] : memref<8x5x5xf32, #tpu.memory_space<vmem>>, vector<1x5x5xf32>
    %207 = vector.shape_cast %206 : vector<1x5x5xf32> to vector<5x5xf32>
    %208 = vector.shape_cast %205 : vector<5x5xf32> to vector<1x5x5xf32>
    tpu.vector_store %arg3[%c6_89, %c0_90, %c0_91], %208 {strides = array<i32>} : memref<8x5x5xf32, #tpu.memory_space<vmem>>, vector<1x5x5xf32>,
    %c7 = arith.constant 7 : index
    %c0_92 = arith.constant 0 : index
    %c0_93 = arith.constant 0 : index
    %209 = vector.load %arg2[%c7, %c0_92, %c0_93] : memref<8x16x16xf32, #tpu.memory_space<vmem>>, vector<1x16x16xf32>
    %210 = vector.shape_cast %209 : vector<1x16x16xf32> to vector<16x16xf32>
    %cst_94 = arith.constant dense<0.000000e+00> : vector<16x5xf32>
    %211 = tpu.matmul %210, %8, %cst_94 {dimension_numbers = #tpu.dot_dimension_numbers<[1], [0], [0], [1], [0, 0, 1, 1], [], []>} : vector<16x16xf32>, vector<16x5xf32>, vector<16x5xf32> -> vector<16x5xf32>
    %cst_95 = arith.constant dense<0.000000e+00> : vector<16x5xf32>
    %212 = tpu.matmul %210, %17, %cst_95 {dimension_numbers = #tpu.dot_dimension_numbers<[1], [0], [0], [1], [0, 0, 1, 1], [], []>} : vector<16x16xf32>, vector<16x5xf32>, vector<16x5xf32> -> vector<16x5xf32>
    %213 = arith.maximumf %211, %212 : vector<16x5xf32>
    %cst_96 = arith.constant dense<0.000000e+00> : vector<16x5xf32>
    %214 = tpu.matmul %210, %26, %cst_96 {dimension_numbers = #tpu.dot_dimension_numbers<[1], [0], [0], [1], [0, 0, 1, 1], [], []>} : vector<16x16xf32>, vector<16x5xf32>, vector<16x5xf32> -> vector<16x5xf32>
    %215 = arith.maximumf %213, %214 : vector<16x5xf32>
    %216 = vector.extract_strided_slice %215 {offsets = [0, 0], sizes = [3, 5], strides = [1, 1]} : vector<16x5xf32> to vector<3x5xf32>
    %cst_97 = arith.constant dense<0xFF800000> : vector<5xf32>
    %217 = vector.multi_reduction <maximumf>, %216, %cst_97 [0] : vector<3x5xf32> to vector<5xf32>
    %218 = vector.shape_cast %217 : vector<5xf32> to vector<1x5xf32>
    %219 = vector.extract_strided_slice %215 {offsets = [3, 0], sizes = [3, 5], strides = [1, 1]} : vector<16x5xf32> to vector<3x5xf32>
    %cst_98 = arith.constant dense<0xFF800000> : vector<5xf32>
    %220 = vector.multi_reduction <maximumf>, %219, %cst_98 [0] : vector<3x5xf32> to vector<5xf32>
    %221 = vector.shape_cast %220 : vector<5xf32> to vector<1x5xf32>
    %222 = vector.extract_strided_slice %215 {offsets = [6, 0], sizes = [3, 5], strides = [1, 1]} : vector<16x5xf32> to vector<3x5xf32>
    %cst_99 = arith.constant dense<0xFF800000> : vector<5xf32>
    %223 = vector.multi_reduction <maximumf>, %222, %cst_99 [0] : vector<3x5xf32> to vector<5xf32>
    %224 = vector.shape_cast %223 : vector<5xf32> to vector<1x5xf32>
    %225 = vector.extract_strided_slice %215 {offsets = [9, 0], sizes = [3, 5], strides = [1, 1]} : vector<16x5xf32> to vector<3x5xf32>
    %cst_100 = arith.constant dense<0xFF800000> : vector<5xf32>
    %226 = vector.multi_reduction <maximumf>, %225, %cst_100 [0] : vector<3x5xf32> to vector<5xf32>
    %227 = vector.shape_cast %226 : vector<5xf32> to vector<1x5xf32>
    %228 = vector.extract_strided_slice %215 {offsets = [12, 0], sizes = [3, 5], strides = [1, 1]} : vector<16x5xf32> to vector<3x5xf32>
    %cst_101 = arith.constant dense<0xFF800000> : vector<5xf32>
    %229 = vector.multi_reduction <maximumf>, %228, %cst_101 [0] : vector<3x5xf32> to vector<5xf32>
    %230 = vector.shape_cast %229 : vector<5xf32> to vector<1x5xf32>
    %231 = tpu.concatenate %218, %221, %224, %227, %230 in 0 : vector<1x5xf32>, vector<1x5xf32>, vector<1x5xf32>, vector<1x5xf32>, vector<1x5xf32> -> vector<5x5xf32>
    %c7_102 = arith.constant 7 : index
    %c0_103 = arith.constant 0 : index
    %c0_104 = arith.constant 0 : index
    %232 = vector.load %arg3[%c7_102, %c0_103, %c0_104] : memref<8x5x5xf32, #tpu.memory_space<vmem>>, vector<1x5x5xf32>
    %233 = vector.shape_cast %232 : vector<1x5x5xf32> to vector<5x5xf32>
    %234 = vector.shape_cast %231 : vector<5x5xf32> to vector<1x5x5xf32>
    tpu.vector_store %arg3[%c7_102, %c0_103, %c0_104], %234 {strides = array<i32>} : memref<8x5x5xf32, #tpu.memory_space<vmem>>, vector<1x5x5xf32>,
    return
  }
  func.func @transform_0(%arg0: i32, %arg1: i32) -> (i32, i32, i32) {
    %c0_i32 = arith.constant 0 : i32
    %c0_i32_0 = arith.constant 0 : i32
    return %arg0, %arg1, %c0_i32 : i32, i32, i32
  }
  func.func @transform_1(%arg0: i32, %arg1: i32) -> (i32, i32, i32) {
    %c0_i32 = arith.constant 0 : i32
    %c0_i32_0 = arith.constant 0 : i32
    return %arg0, %arg1, %c0_i32 : i32, i32, i32
  }
}

</mosaic_0001>

<llo_original>
// kernel: tpu_custom_call.1
$region0: #{tpu_custom_call.1}
  #allocation0 [shape = 'u32[]', space=smem, size = 0x4, offset = 0x4, fixed_abs, tag = 'smem constant byte address 0x4 - core index']
  #allocation1 [shape = 'u32[144,128]{1,0:T(1,128)}', space=vmem, size = 0x12000, scoped, tag = 'internal scratch']
  %s0 = inlined_call_operand.hbm [shape: f32[8,16,16], index: 0, kind: input, shape index: {}]
  %s1 = inlined_call_operand.vmem [shape: f32[8,5,5], index: 1, kind: output, shape index: {}]
  %s2 = sld [smem:[#allocation0]]
  $region18: #{tpu_custom_call.1} parent=0
    _
  %s4 = ssub.s32 1, %s2
  %s5 = scalar_select 0, %s4, %s2
  $region1: #{tpu_custom_call.1} parent=0
    #allocation2 [shape = 'u8[65536]{0}', space=vmem, size = 0x10000, scoped, tag = 'input window, operand 0, single buffered']
    #allocation3 [shape = 's32[1]{0}', space=sflag, size = 0x4, scoped, tag = 'scoped memory for tpu_custom_call.1']
    %6 = vsyncpa [#allocation3], 0
    // Predicated region
    $region2: #{tpu_custom_call.1} parent=1 // pred_check
      _
    $region3: #{tpu_custom_call.1} parent=1 // pred_check_branch
      %8 = sbr.rel (0) target = $region5
    $region4: #{tpu_custom_call.1} parent=1 // pred_region
      %s10 = ssub.s32 2048, 2048
      %11 = vsyncadd [#allocation3], %s10
      %s12 = sshll.u32 [#allocation2], 4
      %s13 = int_to_ptr.vmem [resolvable:$true] %s12
      %18 = dma.hbm_to_vmem [thread:$0]  %s0, 2048, %s13, [#allocation3], 128, 128, 8
    $region5: #{tpu_custom_call.1} parent=1 // pred_fallthru
      _
    // Predicated region
    $region6: #{tpu_custom_call.1} parent=1 // pred_check
      _
    $region7: #{tpu_custom_call.1} parent=1 // pred_check_branch
      %20 = sbr.rel (0) target = $region9
    $region8: #{tpu_custom_call.1} parent=1 // pred_region
      %21 = dma.done [#allocation3], 2048
    $region9: #{tpu_custom_call.1} parent=1 // pred_fallthru
      _
    %v22 = vlaneseq
    %v23 = vshrl.u32 %v22, 7
    %v24 = vadd.s32 %v23, 8
    %v25 = vlaneseq
    %v26 = vand.u32 %v25, 127
    %v27 = vmul.u32 %v26, 3
    %vm28 = vcmp.eq.s32.totalorder %v23, %v27
    %vm29 = vcmp.eq.s32.totalorder %v24, %v27
    %v30 = vsel %vm28, 1, 0
    %v31 = vsel %vm29, 1, 0
    %v32 = vcvt.s32.f32 %v30
    %v33 = vcvt.s32.f32 %v31
    %v34 = vadd.s32 %v27, 1
    %vm35 = vcmp.eq.s32.totalorder %v23, %v34
    %vm36 = vcmp.eq.s32.totalorder %v24, %v34
    %v37 = vsel %vm35, 1, 0
    %v38 = vsel %vm36, 1, 0
    %v39 = vcvt.s32.f32 %v37
    %v40 = vcvt.s32.f32 %v38
    %v41 = vadd.s32 %v27, 2
    %vm42 = vcmp.eq.s32.totalorder %v23, %v41
    %vm43 = vcmp.eq.s32.totalorder %v24, %v41
    %v44 = vsel %vm42, 1, 0
    %v45 = vsel %vm43, 1, 0
    %v46 = vcvt.s32.f32 %v44
    %v47 = vcvt.s32.f32 %v45
    %v48 = vld [vmem:[#allocation2] sm:$0xff]
    %v49 = vld [vmem:[#allocation2 + $0x8] sm:$0xff]
    %vm50 = vcmask 130048
    %v52 = vsel %vm50, %v48, 0
    %v55 = vsel %vm50, %v49, 0
    %57 = vmatprep.subr.mxu0 0.0
    %58 = vmatpush1.msra.mxu0 0.0
    %59 = vmatprep.subr.mxu0 0.0
    %60 = vmatpush1.msra.mxu0 0.0
    %61 = vmatprep.subr.mxu0 0.0
    %62 = vmatpush1.msra.mxu0 0.0
    %63 = vmatprep.subr.mxu0 0.0
    %64 = vmatpush1.msra.mxu0 0.0
    %65 = vmatprep.subr.mxu0 0.0
    %66 = vmatpush1.msra.mxu0 0.0
    %67 = vmatprep.subr.mxu0 0.0
    %68 = vmatpush1.msra.mxu0 0.0
    %69 = vmatprep.subr.mxu0 0.0
    %70 = vmatpush1.msra.mxu0 0.0
    %71 = vmatprep.subr.mxu0 0.0
    %72 = vmatpush1.msra.mxu0 0.0
    %73 = vmatprep.subr.mxu0 0.0
    %74 = vmatpush1.msra.mxu0 0.0
    %75 = vmatprep.subr.mxu0 0.0
    %76 = vmatpush1.msra.mxu0 0.0
    %77 = vmatprep.subr.mxu0 0.0
    %78 = vmatpush1.msra.mxu0 0.0
    %79 = vmatprep.subr.mxu0 0.0
    %80 = vmatpush1.msra.mxu0 0.0
    %81 = vmatprep.subr.mxu0 0.0
    %82 = vmatpush1.msra.mxu0 0.0
    %83 = vmatprep.subr.mxu0 0.0
    %84 = vmatpush1.msra.mxu0 0.0
    %85 = vmatprep.subr.mxu0 0.0
    %86 = vmatpush1.msra.mxu0 %v33
    %87 = vmatprep.subr.mxu0 0.0
    %88 = vmatpush1.msra.mxu0 %v32
    %89 = vmatprep.subr.mxu0 0.0
    %90 = vmatpush2.msra.mxu0 0.0
    %91 = vmatprep.subr.mxu0 0.0
    %92 = vmatpush2.msra.mxu0 0.0
    %93 = vmatprep.subr.mxu0 0.0
    %94 = vmatpush2.msra.mxu0 0.0
    %95 = vmatprep.subr.mxu0 0.0
    %96 = vmatpush2.msra.mxu0 0.0
    %97 = vmatprep.subr.mxu0 0.0
    %98 = vmatpush2.msra.mxu0 0.0
    %99 = vmatprep.subr.mxu0 0.0
    %100 = vmatpush2.msra.mxu0 0.0
    %101 = vmatprep.subr.mxu0 0.0
    %102 = vmatpush2.msra.mxu0 0.0
    %103 = vmatprep.subr.mxu0 0.0
    %104 = vmatpush2.msra.mxu0 0.0
    %105 = vmatprep.subr.mxu0 0.0
    %106 = vmatpush2.msra.mxu0 0.0
    %107 = vmatprep.subr.mxu0 0.0
    %108 = vmatpush2.msra.mxu0 0.0
    %109 = vmatprep.subr.mxu0 0.0
    %110 = vmatpush2.msra.mxu0 0.0
    %111 = vmatprep.subr.mxu0 0.0
    %112 = vmatpush2.msra.mxu0 0.0
    %113 = vmatprep.subr.mxu0 0.0
    %114 = vmatpush2.msra.mxu0 0.0
    %115 = vmatprep.subr.mxu0 0.0
    %116 = vmatpush2.msra.mxu0 0.0
    %117 = vmatprep.subr.mxu0 0.0
    %118 = vmatpush2.msra.mxu0 0.0
    %119 = vmatprep.subr.mxu0 0.0
    %120 = vmatpush2.msra.mxu0 0.0
    %121 = vmatprep.mubr.f32.mxu0 0.0
    %122 = vmatmul.mubr.f32.gmra.mxu0 %v52
    %v123 = vpop.f32.mrf.mxu0
    %v124 = vadd.f32 0.0, %v123
    %v125 = vpop.f32.mrf.mxu0
    %126 = vmatprep.mubr.f32.mxu0 0.0
    %127 = vmatmul.mubr.f32.gmra.mxu0 %v55
    %v128 = vpop.f32.mrf.mxu0
    %v129 = vadd.f32 0.0, %v128
    %v130 = vpop.f32.mrf.mxu0
    %131 = vdwg.mxu0
    %132 = vmatprep.subr.mxu0 0.0
    %133 = vmatpush1.msra.mxu0 0.0
    %134 = vmatprep.subr.mxu0 0.0
    %135 = vmatpush1.msra.mxu0 0.0
    %136 = vmatprep.subr.mxu0 0.0
    %137 = vmatpush1.msra.mxu0 0.0
    %138 = vmatprep.subr.mxu0 0.0
    %139 = vmatpush1.msra.mxu0 0.0
    %140 = vmatprep.subr.mxu0 0.0
    %141 = vmatpush1.msra.mxu0 0.0
    %142 = vmatprep.subr.mxu0 0.0
    %143 = vmatpush1.msra.mxu0 0.0
    %144 = vmatprep.subr.mxu0 0.0
    %145 = vmatpush1.msra.mxu0 0.0
    %146 = vmatprep.subr.mxu0 0.0
    %147 = vmatpush1.msra.mxu0 0.0
    %148 = vmatprep.subr.mxu0 0.0
    %149 = vmatpush1.msra.mxu0 0.0
    %150 = vmatprep.subr.mxu0 0.0
    %151 = vmatpush1.msra.mxu0 0.0
    %152 = vmatprep.subr.mxu0 0.0
    %153 = vmatpush1.msra.mxu0 0.0
    %154 = vmatprep.subr.mxu0 0.0
    %155 = vmatpush1.msra.mxu0 0.0
    %156 = vmatprep.subr.mxu0 0.0
    %157 = vmatpush1.msra.mxu0 0.0
    %158 = vmatprep.subr.mxu0 0.0
    %159 = vmatpush1.msra.mxu0 0.0
    %160 = vmatprep.subr.mxu0 0.0
    %161 = vmatpush1.msra.mxu0 %v40
    %162 = vmatprep.subr.mxu0 0.0
    %163 = vmatpush1.msra.mxu0 %v39
    %164 = vmatprep.subr.mxu0 0.0
    %165 = vmatpush2.msra.mxu0 0.0
    %166 = vmatprep.subr.mxu0 0.0
    %167 = vmatpush2.msra.mxu0 0.0
    %168 = vmatprep.subr.mxu0 0.0
    %169 = vmatpush2.msra.mxu0 0.0
    %170 = vmatprep.subr.mxu0 0.0
    %171 = vmatpush2.msra.mxu0 0.0
    %172 = vmatprep.subr.mxu0 0.0
    %173 = vmatpush2.msra.mxu0 0.0
    %174 = vmatprep.subr.mxu0 0.0
    %175 = vmatpush2.msra.mxu0 0.0
    %176 = vmatprep.subr.mxu0 0.0
    %177 = vmatpush2.msra.mxu0 0.0
    %178 = vmatprep.subr.mxu0 0.0
    %179 = vmatpush2.msra.mxu0 0.0
    %180 = vmatprep.subr.mxu0 0.0
    %181 = vmatpush2.msra.mxu0 0.0
    %182 = vmatprep.subr.mxu0 0.0
    %183 = vmatpush2.msra.mxu0 0.0
    %184 = vmatprep.subr.mxu0 0.0
    %185 = vmatpush2.msra.mxu0 0.0
    %186 = vmatprep.subr.mxu0 0.0
    %187 = vmatpush2.msra.mxu0 0.0
    %188 = vmatprep.subr.mxu0 0.0
    %189 = vmatpush2.msra.mxu0 0.0
    %190 = vmatprep.subr.mxu0 0.0
    %191 = vmatpush2.msra.mxu0 0.0
    %192 = vmatprep.subr.mxu0 0.0
    %193 = vmatpush2.msra.mxu0 0.0
    %194 = vmatprep.subr.mxu0 0.0
    %195 = vmatpush2.msra.mxu0 0.0
    %196 = vmatprep.mubr.f32.mxu0 0.0
    %197 = vmatmul.mubr.f32.gmra.mxu0 %v52
    %v198 = vpop.f32.mrf.mxu0
    %v199 = vadd.f32 0.0, %v198
    %v200 = vpop.f32.mrf.mxu0
    %201 = vmatprep.mubr.f32.mxu0 0.0
    %202 = vmatmul.mubr.f32.gmra.mxu0 %v55
    %v203 = vpop.f32.mrf.mxu0
    %v204 = vadd.f32 0.0, %v203
    %v205 = vpop.f32.mrf.mxu0
    %206 = vdwg.mxu0
    %v207 = vmax.f32 %v124, %v199
    %v208 = vmax.f32 %v129, %v204
    %209 = vmatprep.subr.mxu0 0.0
    %210 = vmatpush1.msra.mxu0 0.0
    %211 = vmatprep.subr.mxu0 0.0
    %212 = vmatpush1.msra.mxu0 0.0
    %213 = vmatprep.subr.mxu0 0.0
    %214 = vmatpush1.msra.mxu0 0.0
    %215 = vmatprep.subr.mxu0 0.0
    %216 = vmatpush1.msra.mxu0 0.0
    %217 = vmatprep.subr.mxu0 0.0
    %218 = vmatpush1.msra.mxu0 0.0
    %219 = vmatprep.subr.mxu0 0.0
    %220 = vmatpush1.msra.mxu0 0.0
    %221 = vmatprep.subr.mxu0 0.0
    %222 = vmatpush1.msra.mxu0 0.0
    %223 = vmatprep.subr.mxu0 0.0
    %224 = vmatpush1.msra.mxu0 0.0
    %225 = vmatprep.subr.mxu0 0.0
    %226 = vmatpush1.msra.mxu0 0.0
    %227 = vmatprep.subr.mxu0 0.0
    %228 = vmatpush1.msra.mxu0 0.0
    %229 = vmatprep.subr.mxu0 0.0
    %230 = vmatpush1.msra.mxu0 0.0
    %231 = vmatprep.subr.mxu0 0.0
    %232 = vmatpush1.msra.mxu0 0.0
    %233 = vmatprep.subr.mxu0 0.0
    %234 = vmatpush1.msra.mxu0 0.0
    %235 = vmatprep.subr.mxu0 0.0
    %236 = vmatpush1.msra.mxu0 0.0
    %237 = vmatprep.subr.mxu0 0.0
    %238 = vmatpush1.msra.mxu0 %v47
    %239 = vmatprep.subr.mxu0 0.0
    %240 = vmatpush1.msra.mxu0 %v46
    %241 = vmatprep.subr.mxu0 0.0
    %242 = vmatpush2.msra.mxu0 0.0
    %243 = vmatprep.subr.mxu0 0.0
    %244 = vmatpush2.msra.mxu0 0.0
    %245 = vmatprep.subr.mxu0 0.0
    %246 = vmatpush2.msra.mxu0 0.0
    %247 = vmatprep.subr.mxu0 0.0
    %248 = vmatpush2.msra.mxu0 0.0
    %249 = vmatprep.subr.mxu0 0.0
    %250 = vmatpush2.msra.mxu0 0.0
    %251 = vmatprep.subr.mxu0 0.0
    %252 = vmatpush2.msra.mxu0 0.0
    %253 = vmatprep.subr.mxu0 0.0
    %254 = vmatpush2.msra.mxu0 0.0
    %255 = vmatprep.subr.mxu0 0.0
    %256 = vmatpush2.msra.mxu0 0.0
    %257 = vmatprep.subr.mxu0 0.0
    %258 = vmatpush2.msra.mxu0 0.0
    %259 = vmatprep.subr.mxu0 0.0
    %260 = vmatpush2.msra.mxu0 0.0
    %261 = vmatprep.subr.mxu0 0.0
    %262 = vmatpush2.msra.mxu0 0.0
    %263 = vmatprep.subr.mxu0 0.0
    %264 = vmatpush2.msra.mxu0 0.0
    %265 = vmatprep.subr.mxu0 0.0
    %266 = vmatpush2.msra.mxu0 0.0
    %267 = vmatprep.subr.mxu0 0.0
    %268 = vmatpush2.msra.mxu0 0.0
    %269 = vmatprep.subr.mxu0 0.0
    %270 = vmatpush2.msra.mxu0 0.0
    %271 = vmatprep.subr.mxu0 0.0
    %272 = vmatpush2.msra.mxu0 0.0
    %273 = vmatprep.mubr.f32.mxu0 0.0
    %274 = vmatmul.mubr.f32.gmra.mxu0 %v52
    %v275 = vpop.f32.mrf.mxu0
    %v276 = vadd.f32 0.0, %v275
    %v277 = vpop.f32.mrf.mxu0
    %278 = vmatprep.mubr.f32.mxu0 0.0
    %279 = vmatmul.mubr.f32.gmra.mxu0 %v55
    %v280 = vpop.f32.mrf.mxu0
    %v281 = vadd.f32 0.0, %v280
    %v282 = vpop.f32.mrf.mxu0
    %283 = vdwg.mxu0
    %v284 = vmax.f32 %v207, %v276
    %v285 = vmax.f32 %v208, %v281
    %vm286 = vcmask 34816
    %v287 = vsel %vm286, %v284, -inf
    %v288 = vrot.slane %v287, 4
    %v289 = vmax.f32 %v287, %v288
    %v290 = vrot.slane %v289, 2
    %v291 = vmax.f32 %v289, %v290
    %v292 = vrot.slane %v291, 1
    %v293 = vmax.f32 %v291, %v292
    %vm294 = vcmask 37891
    %v295 = vsel %vm294, %v284, -inf
    %v296 = vrot.slane %v295, 4
    %v297 = vmax.f32 %v295, %v296
    %v298 = vrot.slane %v297, 2
    %v299 = vmax.f32 %v297, %v298
    %v300 = vrot.slane %v299, 1
    %v301 = vmax.f32 %v299, %v300
    %vm302 = vcmask 39942
    %v303 = vsel %vm302, %v284, -inf
    %vm304 = vcmask 32768
    %v305 = vsel %vm304, %v285, -inf
    %v306 = vmax.f32 %v303, %v305
    %v307 = vrot.slane %v306, 4
    %v308 = vmax.f32 %v306, %v307
    %v309 = vrot.slane %v308, 2
    %v310 = vmax.f32 %v308, %v309
    %v311 = vrot.slane %v310, 1
    %v312 = vmax.f32 %v310, %v311
    %vm313 = vcmask 35841
    %v314 = vsel %vm313, %v285, -inf
    %v315 = vrot.slane %v314, 4
    %v316 = vmax.f32 %v314, %v315
    %v317 = vrot.slane %v316, 2
    %v318 = vmax.f32 %v316, %v317
    %v319 = vrot.slane %v318, 1
    %v320 = vmax.f32 %v318, %v319
    %vm321 = vcmask 38916
    %v322 = vsel %vm321, %v285, -inf
    %v323 = vrot.slane %v322, 4
    %v324 = vmax.f32 %v322, %v323
    %v325 = vrot.slane %v324, 2
    %v326 = vmax.f32 %v324, %v325
    %v327 = vrot.slane %v326, 1
    %v328 = vmax.f32 %v326, %v327
    %vm329 = vcmask 1040384
    %v330 = vsel %vm329, %v293, %v301
    %vm331 = vcmask 1041408
    %v332 = vsel %vm331, %v330, %v312
    %vm333 = vcmask 1042432
    %v334 = vsel %vm333, %v332, %v320
    %vm335 = vcmask 1043456
    %v336 = vsel %vm335, %v334, %v328
    %vm337 = vcmask 36864
    %338 = vst.msk [vmem:[%s1] sm:$0x1f] %vm337, %v336
    %s339 = scalar_lea.vmem [#allocation2], 16
    %v340 = vld [vmem:[%s339] sm:$0xff]
    %v341 = vld [vmem:[%s339 + $0x8] sm:$0xff]
    %v343 = vsel %vm50, %v340, 0
    %v346 = vsel %vm50, %v341, 0
    %348 = vmatprep.subr.mxu0 0.0
    %349 = vmatpush1.msra.mxu0 0.0
    %350 = vmatprep.subr.mxu0 0.0
    %351 = vmatpush1.msra.mxu0 0.0
    %352 = vmatprep.subr.mxu0 0.0
    %353 = vmatpush1.msra.mxu0 0.0
    %354 = vmatprep.subr.mxu0 0.0
    %355 = vmatpush1.msra.mxu0 0.0
    %356 = vmatprep.subr.mxu0 0.0
    %357 = vmatpush1.msra.mxu0 0.0
    %358 = vmatprep.subr.mxu0 0.0
    %359 = vmatpush1.msra.mxu0 0.0
    %360 = vmatprep.subr.mxu0 0.0
    %361 = vmatpush1.msra.mxu0 0.0
    %362 = vmatprep.subr.mxu0 0.0
    %363 = vmatpush1.msra.mxu0 0.0
    %364 = vmatprep.subr.mxu0 0.0
    %365 = vmatpush1.msra.mxu0 0.0
    %366 = vmatprep.subr.mxu0 0.0
    %367 = vmatpush1.msra.mxu0 0.0
    %368 = vmatprep.subr.mxu0 0.0
    %369 = vmatpush1.msra.mxu0 0.0
    %370 = vmatprep.subr.mxu0 0.0
    %371 = vmatpush1.msra.mxu0 0.0
    %372 = vmatprep.subr.mxu0 0.0
    %373 = vmatpush1.msra.mxu0 0.0
    %374 = vmatprep.subr.mxu0 0.0
    %375 = vmatpush1.msra.mxu0 0.0
    %376 = vmatprep.subr.mxu0 0.0
    %377 = vmatpush1.msra.mxu0 %v33
    %378 = vmatprep.subr.mxu0 0.0
    %379 = vmatpush1.msra.mxu0 %v32
    %380 = vmatprep.subr.mxu0 0.0
    %381 = vmatpush2.msra.mxu0 0.0
    %382 = vmatprep.subr.mxu0 0.0
    %383 = vmatpush2.msra.mxu0 0.0
    %384 = vmatprep.subr.mxu0 0.0
    %385 = vmatpush2.msra.mxu0 0.0
    %386 = vmatprep.subr.mxu0 0.0
    %387 = vmatpush2.msra.mxu0 0.0
    %388 = vmatprep.subr.mxu0 0.0
    %389 = vmatpush2.msra.mxu0 0.0
    %390 = vmatprep.subr.mxu0 0.0
    %391 = vmatpush2.msra.mxu0 0.0
    %392 = vmatprep.subr.mxu0 0.0
    %393 = vmatpush2.msra.mxu0 0.0
    %394 = vmatprep.subr.mxu0 0.0
    %395 = vmatpush2.msra.mxu0 0.0
    %396 = vmatprep.subr.mxu0 0.0
    %397 = vmatpush2.msra.mxu0 0.0
    %398 = vmatprep.subr.mxu0 0.0
    %399 = vmatpush2.msra.mxu0 0.0
    %400 = vmatprep.subr.mxu0 0.0
    %401 = vmatpush2.msra.mxu0 0.0
    %402 = vmatprep.subr.mxu0 0.0
    %403 = vmatpush2.msra.mxu0 0.0
    %404 = vmatprep.subr.mxu0 0.0
    %405 = vmatpush2.msra.mxu0 0.0
    %406 = vmatprep.subr.mxu0 0.0
    %407 = vmatpush2.msra.mxu0 0.0
    %408 = vmatprep.subr.mxu0 0.0
    %409 = vmatpush2.msra.mxu0 0.0
    %410 = vmatprep.subr.mxu0 0.0
    %411 = vmatpush2.msra.mxu0 0.0
    %412 = vmatprep.mubr.f32.mxu0 0.0
    %413 = vmatmul.mubr.f32.gmra.mxu0 %v343
    %v414 = vpop.f32.mrf.mxu0
    %v415 = vadd.f32 0.0, %v414
    %v416 = vpop.f32.mrf.mxu0
    %417 = vmatprep.mubr.f32.mxu0 0.0
    %418 = vmatmul.mubr.f32.gmra.mxu0 %v346
    %v419 = vpop.f32.mrf.mxu0
    %v420 = vadd.f32 0.0, %v419
    %v421 = vpop.f32.mrf.mxu0
    %422 = vdwg.mxu0
    %423 = vmatprep.subr.mxu0 0.0
    %424 = vmatpush1.msra.mxu0 0.0
    %425 = vmatprep.subr.mxu0 0.0
    %426 = vmatpush1.msra.mxu0 0.0
    %427 = vmatprep.subr.mxu0 0.0
    %428 = vmatpush1.msra.mxu0 0.0
    %429 = vmatprep.subr.mxu0 0.0
    %430 = vmatpush1.msra.mxu0 0.0
    %431 = vmatprep.subr.mxu0 0.0
    %432 = vmatpush1.msra.mxu0 0.0
    %433 = vmatprep.subr.mxu0 0.0
    %434 = vmatpush1.msra.mxu0 0.0
    %435 = vmatprep.subr.mxu0 0.0
    %436 = vmatpush1.msra.mxu0 0.0
    %437 = vmatprep.subr.mxu0 0.0
    %438 = vmatpush1.msra.mxu0 0.0
    %439 = vmatprep.subr.mxu0 0.0
    %440 = vmatpush1.msra.mxu0 0.0
    %441 = vmatprep.subr.mxu0 0.0
    %442 = vmatpush1.msra.mxu0 0.0
    %443 = vmatprep.subr.mxu0 0.0
    %444 = vmatpush1.msra.mxu0 0.0
    %445 = vmatprep.subr.mxu0 0.0
    %446 = vmatpush1.msra.mxu0 0.0
    %447 = vmatprep.subr.mxu0 0.0
    %448 = vmatpush1.msra.mxu0 0.0
    %449 = vmatprep.subr.mxu0 0.0
    %450 = vmatpush1.msra.mxu0 0.0
    %451 = vmatprep.subr.mxu0 0.0
    %452 = vmatpush1.msra.mxu0 %v40
    %453 = vmatprep.subr.mxu0 0.0
    %454 = vmatpush1.msra.mxu0 %v39
    %455 = vmatprep.subr.mxu0 0.0
    %456 = vmatpush2.msra.mxu0 0.0
    %457 = vmatprep.subr.mxu0 0.0
    %458 = vmatpush2.msra.mxu0 0.0
    %459 = vmatprep.subr.mxu0 0.0
    %460 = vmatpush2.msra.mxu0 0.0
    %461 = vmatprep.subr.mxu0 0.0
    %462 = vmatpush2.msra.mxu0 0.0
    %463 = vmatprep.subr.mxu0 0.0
    %464 = vmatpush2.msra.mxu0 0.0
    %465 = vmatprep.subr.mxu0 0.0
    %466 = vmatpush2.msra.mxu0 0.0
    %467 = vmatprep.subr.mxu0 0.0
    %468 = vmatpush2.msra.mxu0 0.0
    %469 = vmatprep.subr.mxu0 0.0
    %470 = vmatpush2.msra.mxu0 0.0
    %471 = vmatprep.subr.mxu0 0.0
    %472 = vmatpush2.msra.mxu0 0.0
    %473 = vmatprep.subr.mxu0 0.0
    %474 = vmatpush2.msra.mxu0 0.0
    %475 = vmatprep.subr.mxu0 0.0
    %476 = vmatpush2.msra.mxu0 0.0
    %477 = vmatprep.subr.mxu0 0.0
    %478 = vmatpush2.msra.mxu0 0.0
    %479 = vmatprep.subr.mxu0 0.0
    %480 = vmatpush2.msra.mxu0 0.0
    %481 = vmatprep.subr.mxu0 0.0
    %482 = vmatpush2.msra.mxu0 0.0
    %483 = vmatprep.subr.mxu0 0.0
    %484 = vmatpush2.msra.mxu0 0.0
    %485 = vmatprep.subr.mxu0 0.0
    %486 = vmatpush2.msra.mxu0 0.0
    %487 = vmatprep.mubr.f32.mxu0 0.0
    %488 = vmatmul.mubr.f32.gmra.mxu0 %v343
    %v489 = vpop.f32.mrf.mxu0
    %v490 = vadd.f32 0.0, %v489
    %v491 = vpop.f32.mrf.mxu0
    %492 = vmatprep.mubr.f32.mxu0 0.0
    %493 = vmatmul.mubr.f32.gmra.mxu0 %v346
    %v494 = vpop.f32.mrf.mxu0
    %v495 = vadd.f32 0.0, %v494
    %v496 = vpop.f32.mrf.mxu0
    %497 = vdwg.mxu0
    %v498 = vmax.f32 %v415, %v490
    %v499 = vmax.f32 %v420, %v495
    %500 = vmatprep.subr.mxu0 0.0
    %501 = vmatpush1.msra.mxu0 0.0
    %502 = vmatprep.subr.mxu0 0.0
    %503 = vmatpush1.msra.mxu0 0.0
    %504 = vmatprep.subr.mxu0 0.0
    %505 = vmatpush1.msra.mxu0 0.0
    %506 = vmatprep.subr.mxu0 0.0
    %507 = vmatpush1.msra.mxu0 0.0
    %508 = vmatprep.subr.mxu0 0.0
    %509 = vmatpush1.msra.mxu0 0.0
    %510 = vmatprep.subr.mxu0 0.0
    %511 = vmatpush1.msra.mxu0 0.0
    %512 = vmatprep.subr.mxu0 0.0
    %513 = vmatpush1.msra.mxu0 0.0
    %514 = vmatprep.subr.mxu0 0.0
    %515 = vmatpush1.msra.mxu0 0.0
    %516 = vmatprep.subr.mxu0 0.0
    %517 = vmatpush1.msra.mxu0 0.0
    %518 = vmatprep.subr.mxu0 0.0
    %519 = vmatpush1.msra.mxu0 0.0
    %520 = vmatprep.subr.mxu0 0.0
    %521 = vmatpush1.msra.mxu0 0.0
    %522 = vmatprep.subr.mxu0 0.0
    %523 = vmatpush1.msra.mxu0 0.0
    %524 = vmatprep.subr.mxu0 0.0
    %525 = vmatpush1.msra.mxu0 0.0
    %526 = vmatprep.subr.mxu0 0.0
    %527 = vmatpush1.msra.mxu0 0.0
    %528 = vmatprep.subr.mxu0 0.0
    %529 = vmatpush1.msra.mxu0 %v47
    %530 = vmatprep.subr.mxu0 0.0
    %531 = vmatpush1.msra.mxu0 %v46
    %532 = vmatprep.subr.mxu0 0.0
    %533 = vmatpush2.msra.mxu0 0.0
    %534 = vmatprep.subr.mxu0 0.0
    %535 = vmatpush2.msra.mxu0 0.0
    %536 = vmatprep.subr.mxu0 0.0
    %537 = vmatpush2.msra.mxu0 0.0
    %538 = vmatprep.subr.mxu0 0.0
    %539 = vmatpush2.msra.mxu0 0.0
    %540 = vmatprep.subr.mxu0 0.0
    %541 = vmatpush2.msra.mxu0 0.0
    %542 = vmatprep.subr.mxu0 0.0
    %543 = vmatpush2.msra.mxu0 0.0
    %544 = vmatprep.subr.mxu0 0.0
    %545 = vmatpush2.msra.mxu0 0.0
    %546 = vmatprep.subr.mxu0 0.0
    %547 = vmatpush2.msra.mxu0 0.0
    %548 = vmatprep.subr.mxu0 0.0
    %549 = vmatpush2.msra.mxu0 0.0
    %550 = vmatprep.subr.mxu0 0.0
    %551 = vmatpush2.msra.mxu0 0.0
    %552 = vmatprep.subr.mxu0 0.0
    %553 = vmatpush2.msra.mxu0 0.0
    %554 = vmatprep.subr.mxu0 0.0
    %555 = vmatpush2.msra.mxu0 0.0
    %556 = vmatprep.subr.mxu0 0.0
    %557 = vmatpush2.msra.mxu0 0.0
    %558 = vmatprep.subr.mxu0 0.0
    %559 = vmatpush2.msra.mxu0 0.0
    %560 = vmatprep.subr.mxu0 0.0
    %561 = vmatpush2.msra.mxu0 0.0
    %562 = vmatprep.subr.mxu0 0.0
    %563 = vmatpush2.msra.mxu0 0.0
    %564 = vmatprep.mubr.f32.mxu0 0.0
    %565 = vmatmul.mubr.f32.gmra.mxu0 %v343
    %v566 = vpop.f32.mrf.mxu0
    %v567 = vadd.f32 0.0, %v566
    %v568 = vpop.f32.mrf.mxu0
    %569 = vmatprep.mubr.f32.mxu0 0.0
    %570 = vmatmul.mubr.f32.gmra.mxu0 %v346
    %v571 = vpop.f32.mrf.mxu0
    %v572 = vadd.f32 0.0, %v571
    %v573 = vpop.f32.mrf.mxu0
    %574 = vdwg.mxu0
    %v575 = vmax.f32 %v498, %v567
    %v576 = vmax.f32 %v499, %v572
    %v577 = vsel %vm286, %v575, -inf
    %v578 = vrot.slane %v577, 4
    %v579 = vmax.f32 %v577, %v578
    %v580 = vrot.slane %v579, 2
    %v581 = vmax.f32 %v579, %v580
    %v582 = vrot.slane %v581, 1
    %v583 = vmax.f32 %v581, %v582
    %v584 = vsel %vm294, %v575, -inf
    %v585 = vrot.slane %v584, 4
    %v586 = vmax.f32 %v584, %v585
    %v587 = vrot.slane %v586, 2
    %v588 = vmax.f32 %v586, %v587
    %v589 = vrot.slane %v588, 1
    %v590 = vmax.f32 %v588, %v589
    %v591 = vsel %vm302, %v575, -inf
    %v592 = vsel %vm304, %v576, -inf
    %v593 = vmax.f32 %v591, %v592
    %v594 = vrot.slane %v593, 4
    %v595 = vmax.f32 %v593, %v594
    %v596 = vrot.slane %v595, 2
    %v597 = vmax.f32 %v595, %v596
    %v598 = vrot.slane %v597, 1
    %v599 = vmax.f32 %v597, %v598
    %v600 = vsel %vm313, %v576, -inf
    %v601 = vrot.slane %v600, 4
    %v602 = vmax.f32 %v600, %v601
    %v603 = vrot.slane %v602, 2
    %v604 = vmax.f32 %v602, %v603
    %v605 = vrot.slane %v604, 1
    %v606 = vmax.f32 %v604, %v605
    %v607 = vsel %vm321, %v576, -inf
    %v608 = vrot.slane %v607, 4
    %v609 = vmax.f32 %v607, %v608
    %v610 = vrot.slane %v609, 2
    %v611 = vmax.f32 %v609, %v610
    %v612 = vrot.slane %v611, 1
    %v613 = vmax.f32 %v611, %v612
    %v614 = vsel %vm329, %v583, %v590
    %v615 = vsel %vm331, %v614, %v599
    %v616 = vsel %vm333, %v615, %v606
    %v617 = vsel %vm335, %v616, %v613
    %s618 = scalar_lea.vmem %s1, 8
    %619 = vst.msk [vmem:[%s618] sm:$0x1f] %vm337, %v617
    %s620 = scalar_lea.vmem [#allocation2], 32
    %v621 = vld [vmem:[%s620] sm:$0xff]
    %v622 = vld [vmem:[%s620 + $0x8] sm:$0xff]
    %v624 = vsel %vm50, %v621, 0
    %v627 = vsel %vm50, %v622, 0
    %629 = vmatprep.subr.mxu0 0.0
    %630 = vmatpush1.msra.mxu0 0.0
    %631 = vmatprep.subr.mxu0 0.0
    %632 = vmatpush1.msra.mxu0 0.0
    %633 = vmatprep.subr.mxu0 0.0
    %634 = vmatpush1.msra.mxu0 0.0
    %635 = vmatprep.subr.mxu0 0.0
    %636 = vmatpush1.msra.mxu0 0.0
    %637 = vmatprep.subr.mxu0 0.0
    %638 = vmatpush1.msra.mxu0 0.0
    %639 = vmatprep.subr.mxu0 0.0
    %640 = vmatpush1.msra.mxu0 0.0
    %641 = vmatprep.subr.mxu0 0.0
    %642 = vmatpush1.msra.mxu0 0.0
    %643 = vmatprep.subr.mxu0 0.0
    %644 = vmatpush1.msra.mxu0 0.0
    %645 = vmatprep.subr.mxu0 0.0
    %646 = vmatpush1.msra.mxu0 0.0
    %647 = vmatprep.subr.mxu0 0.0
    %648 = vmatpush1.msra.mxu0 0.0
    %649 = vmatprep.subr.mxu0 0.0
    %650 = vmatpush1.msra.mxu0 0.0
    %651 = vmatprep.subr.mxu0 0.0
    %652 = vmatpush1.msra.mxu0 0.0
    %653 = vmatprep.subr.mxu0 0.0
    %654 = vmatpush1.msra.mxu0 0.0
    %655 = vmatprep.subr.mxu0 0.0
    %656 = vmatpush1.msra.mxu0 0.0
    %657 = vmatprep.subr.mxu0 0.0
    %658 = vmatpush1.msra.mxu0 %v33
    %659 = vmatprep.subr.mxu0 0.0
    %660 = vmatpush1.msra.mxu0 %v32
    %661 = vmatprep.subr.mxu0 0.0
    %662 = vmatpush2.msra.mxu0 0.0
    %663 = vmatprep.subr.mxu0 0.0
    %664 = vmatpush2.msra.mxu0 0.0
    %665 = vmatprep.subr.mxu0 0.0
    %666 = vmatpush2.msra.mxu0 0.0
    %667 = vmatprep.subr.mxu0 0.0
    %668 = vmatpush2.msra.mxu0 0.0
    %669 = vmatprep.subr.mxu0 0.0
    %670 = vmatpush2.msra.mxu0 0.0
    %671 = vmatprep.subr.mxu0 0.0
    %672 = vmatpush2.msra.mxu0 0.0
    %673 = vmatprep.subr.mxu0 0.0
    %674 = vmatpush2.msra.mxu0 0.0
    %675 = vmatprep.subr.mxu0 0.0
    %676 = vmatpush2.msra.mxu0 0.0
    %677 = vmatprep.subr.mxu0 0.0
    %678 = vmatpush2.msra.mxu0 0.0
    %679 = vmatprep.subr.mxu0 0.0
    %680 = vmatpush2.msra.mxu0 0.0
    %681 = vmatprep.subr.mxu0 0.0
    %682 = vmatpush2.msra.mxu0 0.0
    %683 = vmatprep.subr.mxu0 0.0
    %684 = vmatpush2.msra.mxu0 0.0
    %685 = vmatprep.subr.mxu0 0.0
    %686 = vmatpush2.msra.mxu0 0.0
    %687 = vmatprep.subr.mxu0 0.0
    %688 = vmatpush2.msra.mxu0 0.0
    %689 = vmatprep.subr.mxu0 0.0
    %690 = vmatpush2.msra.mxu0 0.0
    %691 = vmatprep.subr.mxu0 0.0
    %692 = vmatpush2.msra.mxu0 0.0
    %693 = vmatprep.mubr.f32.mxu0 0.0
    %694 = vmatmul.mubr.f32.gmra.mxu0 %v624
    %v695 = vpop.f32.mrf.mxu0
    %v696 = vadd.f32 0.0, %v695
    %v697 = vpop.f32.mrf.mxu0
    %698 = vmatprep.mubr.f32.mxu0 0.0
    %699 = vmatmul.mubr.f32.gmra.mxu0 %v627
    %v700 = vpop.f32.mrf.mxu0
    %v701 = vadd.f32 0.0, %v700
    %v702 = vpop.f32.mrf.mxu0
    %703 = vdwg.mxu0
    %704 = vmatprep.subr.mxu0 0.0
    %705 = vmatpush1.msra.mxu0 0.0
    %706 = vmatprep.subr.mxu0 0.0
    %707 = vmatpush1.msra.mxu0 0.0
    %708 = vmatprep.subr.mxu0 0.0
    %709 = vmatpush1.msra.mxu0 0.0
    %710 = vmatprep.subr.mxu0 0.0
    %711 = vmatpush1.msra.mxu0 0.0
    %712 = vmatprep.subr.mxu0 0.0
    %713 = vmatpush1.msra.mxu0 0.0
    %714 = vmatprep.subr.mxu0 0.0
    %715 = vmatpush1.msra.mxu0 0.0
    %716 = vmatprep.subr.mxu0 0.0
    %717 = vmatpush1.msra.mxu0 0.0
    %718 = vmatprep.subr.mxu0 0.0
    %719 = vmatpush1.msra.mxu0 0.0
    %720 = vmatprep.subr.mxu0 0.0
    %721 = vmatpush1.msra.mxu0 0.0
    %722 = vmatprep.subr.mxu0 0.0
    %723 = vmatpush1.msra.mxu0 0.0
    %724 = vmatprep.subr.mxu0 0.0
    %725 = vmatpush1.msra.mxu0 0.0
    %726 = vmatprep.subr.mxu0 0.0
    %727 = vmatpush1.msra.mxu0 0.0
    %728 = vmatprep.subr.mxu0 0.0
    %729 = vmatpush1.msra.mxu0 0.0
    %730 = vmatprep.subr.mxu0 0.0
    %731 = vmatpush1.msra.mxu0 0.0
    %732 = vmatprep.subr.mxu0 0.0
    %733 = vmatpush1.msra.mxu0 %v40
    %734 = vmatprep.subr.mxu0 0.0
    %735 = vmatpush1.msra.mxu0 %v39
    %736 = vmatprep.subr.mxu0 0.0
    %737 = vmatpush2.msra.mxu0 0.0
    %738 = vmatprep.subr.mxu0 0.0
    %739 = vmatpush2.msra.mxu0 0.0
    %740 = vmatprep.subr.mxu0 0.0
    %741 = vmatpush2.msra.mxu0 0.0
    %742 = vmatprep.subr.mxu0 0.0
    %743 = vmatpush2.msra.mxu0 0.0
    %744 = vmatprep.subr.mxu0 0.0
    %745 = vmatpush2.msra.mxu0 0.0
    %746 = vmatprep.subr.mxu0 0.0
    %747 = vmatpush2.msra.mxu0 0.0
    %748 = vmatprep.subr.mxu0 0.0
    %749 = vmatpush2.msra.mxu0 0.0
    %750 = vmatprep.subr.mxu0 0.0
    %751 = vmatpush2.msra.mxu0 0.0
    %752 = vmatprep.subr.mxu0 0.0
    %753 = vmatpush2.msra.mxu0 0.0
    %754 = vmatprep.subr.mxu0 0.0
    %755 = vmatpush2.msra.mxu0 0.0
    %756 = vmatprep.subr.mxu0 0.0
    %757 = vmatpush2.msra.mxu0 0.0
    %758 = vmatprep.subr.mxu0 0.0
    %759 = vmatpush2.msra.mxu0 0.0
    %760 = vmatprep.subr.mxu0 0.0
    %761 = vmatpush2.msra.mxu0 0.0
    %762 = vmatprep.subr.mxu0 0.0
    %763 = vmatpush2.msra.mxu0 0.0
    %764 = vmatprep.subr.mxu0 0.0
    %765 = vmatpush2.msra.mxu0 0.0
    %766 = vmatprep.subr.mxu0 0.0
    %767 = vmatpush2.msra.mxu0 0.0
    %768 = vmatprep.mubr.f32.mxu0 0.0
    %769 = vmatmul.mubr.f32.gmra.mxu0 %v624
    %v770 = vpop.f32.mrf.mxu0
    %v771 = vadd.f32 0.0, %v770
    %v772 = vpop.f32.mrf.mxu0
    %773 = vmatprep.mubr.f32.mxu0 0.0
    %774 = vmatmul.mubr.f32.gmra.mxu0 %v627
    %v775 = vpop.f32.mrf.mxu0
    %v776 = vadd.f32 0.0, %v775
    %v777 = vpop.f32.mrf.mxu0
    %778 = vdwg.mxu0
    %v779 = vmax.f32 %v696, %v771
    %v780 = vmax.f32 %v701, %v776
    %781 = vmatprep.subr.mxu0 0.0
    %782 = vmatpush1.msra.mxu0 0.0
    %783 = vmatprep.subr.mxu0 0.0
    %784 = vmatpush1.msra.mxu0 0.0
    %785 = vmatprep.subr.mxu0 0.0
    %786 = vmatpush1.msra.mxu0 0.0
    %787 = vmatprep.subr.mxu0 0.0
    %788 = vmatpush1.msra.mxu0 0.0
    %789 = vmatprep.subr.mxu0 0.0
    %790 = vmatpush1.msra.mxu0 0.0
    %791 = vmatprep.subr.mxu0 0.0
    %792 = vmatpush1.msra.mxu0 0.0
    %793 = vmatprep.subr.mxu0 0.0
    %794 = vmatpush1.msra.mxu0 0.0
    %795 = vmatprep.subr.mxu0 0.0
    %796 = vmatpush1.msra.mxu0 0.0
    %797 = vmatprep.subr.mxu0 0.0
    %798 = vmatpush1.msra.mxu0 0.0
    %799 = vmatprep.subr.mxu0 0.0
    %800 = vmatpush1.msra.mxu0 0.0
    %801 = vmatprep.subr.mxu0 0.0
    %802 = vmatpush1.msra.mxu0 0.0
    %803 = vmatprep.subr.mxu0 0.0
    %804 = vmatpush1.msra.mxu0 0.0
    %805 = vmatprep.subr.mxu0 0.0
    %806 = vmatpush1.msra.mxu0 0.0
    %807 = vmatprep.subr.mxu0 0.0
    %808 = vmatpush1.msra.mxu0 0.0
    %809 = vmatprep.subr.mxu0 0.0
    %810 = vmatpush1.msra.mxu0 %v47
    %811 = vmatprep.subr.mxu0 0.0
    %812 = vmatpush1.msra.mxu0 %v46
    %813 = vmatprep.subr.mxu0 0.0
    %814 = vmatpush2.msra.mxu0 0.0
    %815 = vmatprep.subr.mxu0 0.0
    %816 = vmatpush2.msra.mxu0 0.0
    %817 = vmatprep.subr.mxu0 0.0
    %818 = vmatpush2.msra.mxu0 0.0
    %819 = vmatprep.subr.mxu0 0.0
    %820 = vmatpush2.msra.mxu0 0.0
    %821 = vmatprep.subr.mxu0 0.0
    %822 = vmatpush2.msra.mxu0 0.0
    %823 = vmatprep.subr.mxu0 0.0
    %824 = vmatpush2.msra.mxu0 0.0
    %825 = vmatprep.subr.mxu0 0.0
    %826 = vmatpush2.msra.mxu0 0.0
    %827 = vmatprep.subr.mxu0 0.0
    %828 = vmatpush2.msra.mxu0 0.0
    %829 = vmatprep.subr.mxu0 0.0
    %830 = vmatpush2.msra.mxu0 0.0
    %831 = vmatprep.subr.mxu0 0.0
    %832 = vmatpush2.msra.mxu0 0.0
    %833 = vmatprep.subr.mxu0 0.0
    %834 = vmatpush2.msra.mxu0 0.0
    %835 = vmatprep.subr.mxu0 0.0
    %836 = vmatpush2.msra.mxu0 0.0
    %837 = vmatprep.subr.mxu0 0.0
    %838 = vmatpush2.msra.mxu0 0.0
    %839 = vmatprep.subr.mxu0 0.0
    %840 = vmatpush2.msra.mxu0 0.0
    %841 = vmatprep.subr.mxu0 0.0
    %842 = vmatpush2.msra.mxu0 0.0
    %843 = vmatprep.subr.mxu0 0.0
    %844 = vmatpush2.msra.mxu0 0.0
    %845 = vmatprep.mubr.f32.mxu0 0.0
    %846 = vmatmul.mubr.f32.gmra.mxu0 %v624
    %v847 = vpop.f32.mrf.mxu0
    %v848 = vadd.f32 0.0, %v847
    %v849 = vpop.f32.mrf.mxu0
    %850 = vmatprep.mubr.f32.mxu0 0.0
    %851 = vmatmul.mubr.f32.gmra.mxu0 %v627
    %v852 = vpop.f32.mrf.mxu0
    %v853 = vadd.f32 0.0, %v852
    %v854 = vpop.f32.mrf.mxu0
    %855 = vdwg.mxu0
    %v856 = vmax.f32 %v779, %v848
    %v857 = vmax.f32 %v780, %v853
    %v858 = vsel %vm286, %v856, -inf
    %v859 = vrot.slane %v858, 4
    %v860 = vmax.f32 %v858, %v859
    %v861 = vrot.slane %v860, 2
    %v862 = vmax.f32 %v860, %v861
    %v863 = vrot.slane %v862, 1
    %v864 = vmax.f32 %v862, %v863
    %v865 = vsel %vm294, %v856, -inf
    %v866 = vrot.slane %v865, 4
    %v867 = vmax.f32 %v865, %v866
    %v868 = vrot.slane %v867, 2
    %v869 = vmax.f32 %v867, %v868
    %v870 = vrot.slane %v869, 1
    %v871 = vmax.f32 %v869, %v870
    %v872 = vsel %vm302, %v856, -inf
    %v873 = vsel %vm304, %v857, -inf
    %v874 = vmax.f32 %v872, %v873
    %v875 = vrot.slane %v874, 4
    %v876 = vmax.f32 %v874, %v875
    %v877 = vrot.slane %v876, 2
    %v878 = vmax.f32 %v876, %v877
    %v879 = vrot.slane %v878, 1
    %v880 = vmax.f32 %v878, %v879
    %v881 = vsel %vm313, %v857, -inf
    %v882 = vrot.slane %v881, 4
    %v883 = vmax.f32 %v881, %v882
    %v884 = vrot.slane %v883, 2
    %v885 = vmax.f32 %v883, %v884
    %v886 = vrot.slane %v885, 1
    %v887 = vmax.f32 %v885, %v886
    %v888 = vsel %vm321, %v857, -inf
    %v889 = vrot.slane %v888, 4
    %v890 = vmax.f32 %v888, %v889
    %v891 = vrot.slane %v890, 2
    %v892 = vmax.f32 %v890, %v891
    %v893 = vrot.slane %v892, 1
    %v894 = vmax.f32 %v892, %v893
    %v895 = vsel %vm329, %v864, %v871
    %v896 = vsel %vm331, %v895, %v880
    %v897 = vsel %vm333, %v896, %v887
    %v898 = vsel %vm335, %v897, %v894
    %s899 = scalar_lea.vmem %s1, 16
    %900 = vst.msk [vmem:[%s899] sm:$0x1f] %vm337, %v898
    %s901 = scalar_lea.vmem [#allocation2], 48
    %v902 = vld [vmem:[%s901] sm:$0xff]
    %v903 = vld [vmem:[%s901 + $0x8] sm:$0xff]
    %v905 = vsel %vm50, %v902, 0
    %v908 = vsel %vm50, %v903, 0
    %910 = vmatprep.subr.mxu0 0.0
    %911 = vmatpush1.msra.mxu0 0.0
    %912 = vmatprep.subr.mxu0 0.0
    %913 = vmatpush1.msra.mxu0 0.0
    %914 = vmatprep.subr.mxu0 0.0
    %915 = vmatpush1.msra.mxu0 0.0
    %916 = vmatprep.subr.mxu0 0.0
    %917 = vmatpush1.msra.mxu0 0.0
    %918 = vmatprep.subr.mxu0 0.0
    %919 = vmatpush1.msra.mxu0 0.0
    %920 = vmatprep.subr.mxu0 0.0
    %921 = vmatpush1.msra.mxu0 0.0
    %922 = vmatprep.subr.mxu0 0.0
    %923 = vmatpush1.msra.mxu0 0.0
    %924 = vmatprep.subr.mxu0 0.0
    %925 = vmatpush1.msra.mxu0 0.0
    %926 = vmatprep.subr.mxu0 0.0
    %927 = vmatpush1.msra.mxu0 0.0
    %928 = vmatprep.subr.mxu0 0.0
    %929 = vmatpush1.msra.mxu0 0.0
    %930 = vmatprep.subr.mxu0 0.0
    %931 = vmatpush1.msra.mxu0 0.0
    %932 = vmatprep.subr.mxu0 0.0
    %933 = vmatpush1.msra.mxu0 0.0
    %934 = vmatprep.subr.mxu0 0.0
    %935 = vmatpush1.msra.mxu0 0.0
    %936 = vmatprep.subr.mxu0 0.0
    %937 = vmatpush1.msra.mxu0 0.0
    %938 = vmatprep.subr.mxu0 0.0
    %939 = vmatpush1.msra.mxu0 %v33
    %940 = vmatprep.subr.mxu0 0.0
    %941 = vmatpush1.msra.mxu0 %v32
    %942 = vmatprep.subr.mxu0 0.0
    %943 = vmatpush2.msra.mxu0 0.0
    %944 = vmatprep.subr.mxu0 0.0
    %945 = vmatpush2.msra.mxu0 0.0
    %946 = vmatprep.subr.mxu0 0.0
    %947 = vmatpush2.msra.mxu0 0.0
    %948 = vmatprep.subr.mxu0 0.0
    %949 = vmatpush2.msra.mxu0 0.0
    %950 = vmatprep.subr.mxu0 0.0
    %951 = vmatpush2.msra.mxu0 0.0
    %952 = vmatprep.subr.mxu0 0.0
    %953 = vmatpush2.msra.mxu0 0.0
    %954 = vmatprep.subr.mxu0 0.0
    %955 = vmatpush2.msra.mxu0 0.0
    %956 = vmatprep.subr.mxu0 0.0
    %957 = vmatpush2.msra.mxu0 0.0
    %958 = vmatprep.subr.mxu0 0.0
    %959 = vmatpush2.msra.mxu0 0.0
    %960 = vmatprep.subr.mxu0 0.0
    %961 = vmatpush2.msra.mxu0 0.0
    %962 = vmatprep.subr.mxu0 0.0
    %963 = vmatpush2.msra.mxu0 0.0
    %964 = vmatprep.subr.mxu0 0.0
    %965 = vmatpush2.msra.mxu0 0.0
    %966 = vmatprep.subr.mxu0 0.0
    %967 = vmatpush2.msra.mxu0 0.0
    %968 = vmatprep.subr.mxu0 0.0
    %969 = vmatpush2.msra.mxu0 0.0
    %970 = vmatprep.subr.mxu0 0.0
    %971 = vmatpush2.msra.mxu0 0.0
    %972 = vmatprep.subr.mxu0 0.0
    %973 = vmatpush2.msra.mxu0 0.0
    %974 = vmatprep.mubr.f32.mxu0 0.0
    %975 = vmatmul.mubr.f32.gmra.mxu0 %v905
    %v976 = vpop.f32.mrf.mxu0
    %v977 = vadd.f32 0.0, %v976
    %v978 = vpop.f32.mrf.mxu0
    %979 = vmatprep.mubr.f32.mxu0 0.0
    %980 = vmatmul.mubr.f32.gmra.mxu0 %v908
    %v981 = vpop.f32.mrf.mxu0
    %v982 = vadd.f32 0.0, %v981
    %v983 = vpop.f32.mrf.mxu0
    %984 = vdwg.mxu0
    %985 = vmatprep.subr.mxu0 0.0
    %986 = vmatpush1.msra.mxu0 0.0
    %987 = vmatprep.subr.mxu0 0.0
    %988 = vmatpush1.msra.mxu0 0.0
    %989 = vmatprep.subr.mxu0 0.0
    %990 = vmatpush1.msra.mxu0 0.0
    %991 = vmatprep.subr.mxu0 0.0
    %992 = vmatpush1.msra.mxu0 0.0
    %993 = vmatprep.subr.mxu0 0.0
    %994 = vmatpush1.msra.mxu0 0.0
    %995 = vmatprep.subr.mxu0 0.0
    %996 = vmatpush1.msra.mxu0 0.0
    %997 = vmatprep.subr.mxu0 0.0
    %998 = vmatpush1.msra.mxu0 0.0
    %999 = vmatprep.subr.mxu0 0.0
    %1000 = vmatpush1.msra.mxu0 0.0
    %1001 = vmatprep.subr.mxu0 0.0
    %1002 = vmatpush1.msra.mxu0 0.0
    %1003 = vmatprep.subr.mxu0 0.0
    %1004 = vmatpush1.msra.mxu0 0.0
    %1005 = vmatprep.subr.mxu0 0.0
    %1006 = vmatpush1.msra.mxu0 0.0
    %1007 = vmatprep.subr.mxu0 0.0
    %1008 = vmatpush1.msra.mxu0 0.0
    %1009 = vmatprep.subr.mxu0 0.0
    %1010 = vmatpush1.msra.mxu0 0.0
    %1011 = vmatprep.subr.mxu0 0.0
    %1012 = vmatpush1.msra.mxu0 0.0
    %1013 = vmatprep.subr.mxu0 0.0
    %1014 = vmatpush1.msra.mxu0 %v40
    %1015 = vmatprep.subr.mxu0 0.0
    %1016 = vmatpush1.msra.mxu0 %v39
    %1017 = vmatprep.subr.mxu0 0.0
    %1018 = vmatpush2.msra.mxu0 0.0
    %1019 = vmatprep.subr.mxu0 0.0
    %1020 = vmatpush2.msra.mxu0 0.0
    %1021 = vmatprep.subr.mxu0 0.0
    %1022 = vmatpush2.msra.mxu0 0.0
    %1023 = vmatprep.subr.mxu0 0.0
    %1024 = vmatpush2.msra.mxu0 0.0
    %1025 = vmatprep.subr.mxu0 0.0
    %1026 = vmatpush2.msra.mxu0 0.0
    %1027 = vmatprep.subr.mxu0 0.0
    %1028 = vmatpush2.msra.mxu0 0.0
    %1029 = vmatprep.subr.mxu0 0.0
    %1030 = vmatpush2.msra.mxu0 0.0
    %1031 = vmatprep.subr.mxu0 0.0
    %1032 = vmatpush2.msra.mxu0 0.0
    %1033 = vmatprep.subr.mxu0 0.0
    %1034 = vmatpush2.msra.mxu0 0.0
    %1035 = vmatprep.subr.mxu0 0.0
    %1036 = vmatpush2.msra.mxu0 0.0
    %1037 = vmatprep.subr.mxu0 0.0
    %1038 = vmatpush2.msra.mxu0 0.0
    %1039 = vmatprep.subr.mxu0 0.0
    %1040 = vmatpush2.msra.mxu0 0.0
    %1041 = vmatprep.subr.mxu0 0.0
    %1042 = vmatpush2.msra.mxu0 0.0
    %1043 = vmatprep.subr.mxu0 0.0
    %1044 = vmatpush2.msra.mxu0 0.0
    %1045 = vmatprep.subr.mxu0 0.0
    %1046 = vmatpush2.msra.mxu0 0.0
    %1047 = vmatprep.subr.mxu0 0.0
    %1048 = vmatpush2.msra.mxu0 0.0
    %1049 = vmatprep.mubr.f32.mxu0 0.0
    %1050 = vmatmul.mubr.f32.gmra.mxu0 %v905
    %v1051 = vpop.f32.mrf.mxu0
    %v1052 = vadd.f32 0.0, %v1051
    %v1053 = vpop.f32.mrf.mxu0
    %1054 = vmatprep.mubr.f32.mxu0 0.0
    %1055 = vmatmul.mubr.f32.gmra.mxu0 %v908
    %v1056 = vpop.f32.mrf.mxu0
    %v1057 = vadd.f32 0.0, %v1056
    %v1058 = vpop.f32.mrf.mxu0
    %1059 = vdwg.mxu0
    %v1060 = vmax.f32 %v977, %v1052
    %v1061 = vmax.f32 %v982, %v1057
    %1062 = vmatprep.subr.mxu0 0.0
    %1063 = vmatpush1.msra.mxu0 0.0
    %1064 = vmatprep.subr.mxu0 0.0
    %1065 = vmatpush1.msra.mxu0 0.0
    %1066 = vmatprep.subr.mxu0 0.0
    %1067 = vmatpush1.msra.mxu0 0.0
    %1068 = vmatprep.subr.mxu0 0.0
    %1069 = vmatpush1.msra.mxu0 0.0
    %1070 = vmatprep.subr.mxu0 0.0
    %1071 = vmatpush1.msra.mxu0 0.0
    %1072 = vmatprep.subr.mxu0 0.0
    %1073 = vmatpush1.msra.mxu0 0.0
    %1074 = vmatprep.subr.mxu0 0.0
    %1075 = vmatpush1.msra.mxu0 0.0
    %1076 = vmatprep.subr.mxu0 0.0
    %1077 = vmatpush1.msra.mxu0 0.0
    %1078 = vmatprep.subr.mxu0 0.0
    %1079 = vmatpush1.msra.mxu0 0.0
    %1080 = vmatprep.subr.mxu0 0.0
    %1081 = vmatpush1.msra.mxu0 0.0
    %1082 = vmatprep.subr.mxu0 0.0
    %1083 = vmatpush1.msra.mxu0 0.0
    %1084 = vmatprep.subr.mxu0 0.0
    %1085 = vmatpush1.msra.mxu0 0.0
    %1086 = vmatprep.subr.mxu0 0.0
    %1087 = vmatpush1.msra.mxu0 0.0
    %1088 = vmatprep.subr.mxu0 0.0
    %1089 = vmatpush1.msra.mxu0 0.0
    %1090 = vmatprep.subr.mxu0 0.0
    %1091 = vmatpush1.msra.mxu0 %v47
    %1092 = vmatprep.subr.mxu0 0.0
    %1093 = vmatpush1.msra.mxu0 %v46
    %1094 = vmatprep.subr.mxu0 0.0
    %1095 = vmatpush2.msra.mxu0 0.0
    %1096 = vmatprep.subr.mxu0 0.0
    %1097 = vmatpush2.msra.mxu0 0.0
    %1098 = vmatprep.subr.mxu0 0.0
    %1099 = vmatpush2.msra.mxu0 0.0
    %1100 = vmatprep.subr.mxu0 0.0
    %1101 = vmatpush2.msra.mxu0 0.0
    %1102 = vmatprep.subr.mxu0 0.0
    %1103 = vmatpush2.msra.mxu0 0.0
    %1104 = vmatprep.subr.mxu0 0.0
    %1105 = vmatpush2.msra.mxu0 0.0
    %1106 = vmatprep.subr.mxu0 0.0
    %1107 = vmatpush2.msra.mxu0 0.0
    %1108 = vmatprep.subr.mxu0 0.0
    %1109 = vmatpush2.msra.mxu0 0.0
    %1110 = vmatprep.subr.mxu0 0.0
    %1111 = vmatpush2.msra.mxu0 0.0
    %1112 = vmatprep.subr.mxu0 0.0
    %1113 = vmatpush2.msra.mxu0 0.0
    %1114 = vmatprep.subr.mxu0 0.0
    %1115 = vmatpush2.msra.mxu0 0.0
    %1116 = vmatprep.subr.mxu0 0.0
    %1117 = vmatpush2.msra.mxu0 0.0
    %1118 = vmatprep.subr.mxu0 0.0
    %1119 = vmatpush2.msra.mxu0 0.0
    %1120 = vmatprep.subr.mxu0 0.0
    %1121 = vmatpush2.msra.mxu0 0.0
    %1122 = vmatprep.subr.mxu0 0.0
    %1123 = vmatpush2.msra.mxu0 0.0
    %1124 = vmatprep.subr.mxu0 0.0
    %1125 = vmatpush2.msra.mxu0 0.0
    %1126 = vmatprep.mubr.f32.mxu0 0.0
    %1127 = vmatmul.mubr.f32.gmra.mxu0 %v905
    %v1128 = vpop.f32.mrf.mxu0
    %v1129 = vadd.f32 0.0, %v1128
    %v1130 = vpop.f32.mrf.mxu0
    %1131 = vmatprep.mubr.f32.mxu0 0.0
    %1132 = vmatmul.mubr.f32.gmra.mxu0 %v908
    %v1133 = vpop.f32.mrf.mxu0
    %v1134 = vadd.f32 0.0, %v1133
    %v1135 = vpop.f32.mrf.mxu0
    %1136 = vdwg.mxu0
    %v1137 = vmax.f32 %v1060, %v1129
    %v1138 = vmax.f32 %v1061, %v1134
    %v1139 = vsel %vm286, %v1137, -inf
    %v1140 = vrot.slane %v1139, 4
    %v1141 = vmax.f32 %v1139, %v1140
    %v1142 = vrot.slane %v1141, 2
    %v1143 = vmax.f32 %v1141, %v1142
    %v1144 = vrot.slane %v1143, 1
    %v1145 = vmax.f32 %v1143, %v1144
    %v1146 = vsel %vm294, %v1137, -inf
    %v1147 = vrot.slane %v1146, 4
    %v1148 = vmax.f32 %v1146, %v1147
    %v1149 = vrot.slane %v1148, 2
    %v1150 = vmax.f32 %v1148, %v1149
    %v1151 = vrot.slane %v1150, 1
    %v1152 = vmax.f32 %v1150, %v1151
    %v1153 = vsel %vm302, %v1137, -inf
    %v1154 = vsel %vm304, %v1138, -inf
    %v1155 = vmax.f32 %v1153, %v1154
    %v1156 = vrot.slane %v1155, 4
    %v1157 = vmax.f32 %v1155, %v1156
    %v1158 = vrot.slane %v1157, 2
    %v1159 = vmax.f32 %v1157, %v1158
    %v1160 = vrot.slane %v1159, 1
    %v1161 = vmax.f32 %v1159, %v1160
    %v1162 = vsel %vm313, %v1138, -inf
    %v1163 = vrot.slane %v1162, 4
    %v1164 = vmax.f32 %v1162, %v1163
    %v1165 = vrot.slane %v1164, 2
    %v1166 = vmax.f32 %v1164, %v1165
    %v1167 = vrot.slane %v1166, 1
    %v1168 = vmax.f32 %v1166, %v1167
    %v1169 = vsel %vm321, %v1138, -inf
    %v1170 = vrot.slane %v1169, 4
    %v1171 = vmax.f32 %v1169, %v1170
    %v1172 = vrot.slane %v1171, 2
    %v1173 = vmax.f32 %v1171, %v1172
    %v1174 = vrot.slane %v1173, 1
    %v1175 = vmax.f32 %v1173, %v1174
    %v1176 = vsel %vm329, %v1145, %v1152
    %v1177 = vsel %vm331, %v1176, %v1161
    %v1178 = vsel %vm333, %v1177, %v1168
    %v1179 = vsel %vm335, %v1178, %v1175
    %s1180 = scalar_lea.vmem %s1, 24
    %1181 = vst.msk [vmem:[%s1180] sm:$0x1f] %vm337, %v1179
    %s1182 = scalar_lea.vmem [#allocation2], 64
    %v1183 = vld [vmem:[%s1182] sm:$0xff]
    %v1184 = vld [vmem:[%s1182 + $0x8] sm:$0xff]
    %v1186 = vsel %vm50, %v1183, 0
    %v1189 = vsel %vm50, %v1184, 0
    %1191 = vmatprep.subr.mxu0 0.0
    %1192 = vmatpush1.msra.mxu0 0.0
    %1193 = vmatprep.subr.mxu0 0.0
    %1194 = vmatpush1.msra.mxu0 0.0
    %1195 = vmatprep.subr.mxu0 0.0
    %1196 = vmatpush1.msra.mxu0 0.0
    %1197 = vmatprep.subr.mxu0 0.0
    %1198 = vmatpush1.msra.mxu0 0.0
    %1199 = vmatprep.subr.mxu0 0.0
    %1200 = vmatpush1.msra.mxu0 0.0
    %1201 = vmatprep.subr.mxu0 0.0
    %1202 = vmatpush1.msra.mxu0 0.0
    %1203 = vmatprep.subr.mxu0 0.0
    %1204 = vmatpush1.msra.mxu0 0.0
    %1205 = vmatprep.subr.mxu0 0.0
    %1206 = vmatpush1.msra.mxu0 0.0
    %1207 = vmatprep.subr.mxu0 0.0
    %1208 = vmatpush1.msra.mxu0 0.0
    %1209 = vmatprep.subr.mxu0 0.0
    %1210 = vmatpush1.msra.mxu0 0.0
    %1211 = vmatprep.subr.mxu0 0.0
    %1212 = vmatpush1.msra.mxu0 0.0
    %1213 = vmatprep.subr.mxu0 0.0
    %1214 = vmatpush1.msra.mxu0 0.0
    %1215 = vmatprep.subr.mxu0 0.0
    %1216 = vmatpush1.msra.mxu0 0.0
    %1217 = vmatprep.subr.mxu0 0.0
    %1218 = vmatpush1.msra.mxu0 0.0
    %1219 = vmatprep.subr.mxu0 0.0
    %1220 = vmatpush1.msra.mxu0 %v33
    %1221 = vmatprep.subr.mxu0 0.0
    %1222 = vmatpush1.msra.mxu0 %v32
    %1223 = vmatprep.subr.mxu0 0.0
    %1224 = vmatpush2.msra.mxu0 0.0
    %1225 = vmatprep.subr.mxu0 0.0
    %1226 = vmatpush2.msra.mxu0 0.0
    %1227 = vmatprep.subr.mxu0 0.0
    %1228 = vmatpush2.msra.mxu0 0.0
    %1229 = vmatprep.subr.mxu0 0.0
    %1230 = vmatpush2.msra.mxu0 0.0
    %1231 = vmatprep.subr.mxu0 0.0
    %1232 = vmatpush2.msra.mxu0 0.0
    %1233 = vmatprep.subr.mxu0 0.0
    %1234 = vmatpush2.msra.mxu0 0.0
    %1235 = vmatprep.subr.mxu0 0.0
    %1236 = vmatpush2.msra.mxu0 0.0
    %1237 = vmatprep.subr.mxu0 0.0
    %1238 = vmatpush2.msra.mxu0 0.0
    %1239 = vmatprep.subr.mxu0 0.0
    %1240 = vmatpush2.msra.mxu0 0.0
    %1241 = vmatprep.subr.mxu0 0.0
    %1242 = vmatpush2.msra.mxu0 0.0
    %1243 = vmatprep.subr.mxu0 0.0
    %1244 = vmatpush2.msra.mxu0 0.0
    %1245 = vmatprep.subr.mxu0 0.0
    %1246 = vmatpush2.msra.mxu0 0.0
    %1247 = vmatprep.subr.mxu0 0.0
    %1248 = vmatpush2.msra.mxu0 0.0
    %1249 = vmatprep.subr.mxu0 0.0
    %1250 = vmatpush2.msra.mxu0 0.0
    %1251 = vmatprep.subr.mxu0 0.0
    %1252 = vmatpush2.msra.mxu0 0.0
    %1253 = vmatprep.subr.mxu0 0.0
    %1254 = vmatpush2.msra.mxu0 0.0
    %1255 = vmatprep.mubr.f32.mxu0 0.0
    %1256 = vmatmul.mubr.f32.gmra.mxu0 %v1186
    %v1257 = vpop.f32.mrf.mxu0
    %v1258 = vadd.f32 0.0, %v1257
    %v1259 = vpop.f32.mrf.mxu0
    %1260 = vmatprep.mubr.f32.mxu0 0.0
    %1261 = vmatmul.mubr.f32.gmra.mxu0 %v1189
    %v1262 = vpop.f32.mrf.mxu0
    %v1263 = vadd.f32 0.0, %v1262
    %v1264 = vpop.f32.mrf.mxu0
    %1265 = vdwg.mxu0
    %1266 = vmatprep.subr.mxu0 0.0
    %1267 = vmatpush1.msra.mxu0 0.0
    %1268 = vmatprep.subr.mxu0 0.0
    %1269 = vmatpush1.msra.mxu0 0.0
    %1270 = vmatprep.subr.mxu0 0.0
    %1271 = vmatpush1.msra.mxu0 0.0
    %1272 = vmatprep.subr.mxu0 0.0
    %1273 = vmatpush1.msra.mxu0 0.0
    %1274 = vmatprep.subr.mxu0 0.0
    %1275 = vmatpush1.msra.mxu0 0.0
    %1276 = vmatprep.subr.mxu0 0.0
    %1277 = vmatpush1.msra.mxu0 0.0
    %1278 = vmatprep.subr.mxu0 0.0
    %1279 = vmatpush1.msra.mxu0 0.0
    %1280 = vmatprep.subr.mxu0 0.0
    %1281 = vmatpush1.msra.mxu0 0.0
    %1282 = vmatprep.subr.mxu0 0.0
    %1283 = vmatpush1.msra.mxu0 0.0
    %1284 = vmatprep.subr.mxu0 0.0
    %1285 = vmatpush1.msra.mxu0 0.0
    %1286 = vmatprep.subr.mxu0 0.0
    %1287 = vmatpush1.msra.mxu0 0.0
    %1288 = vmatprep.subr.mxu0 0.0
    %1289 = vmatpush1.msra.mxu0 0.0
    %1290 = vmatprep.subr.mxu0 0.0
    %1291 = vmatpush1.msra.mxu0 0.0
    %1292 = vmatprep.subr.mxu0 0.0
    %1293 = vmatpush1.msra.mxu0 0.0
    %1294 = vmatprep.subr.mxu0 0.0
    %1295 = vmatpush1.msra.mxu0 %v40
    %1296 = vmatprep.subr.mxu0 0.0
    %1297 = vmatpush1.msra.mxu0 %v39
    %1298 = vmatprep.subr.mxu0 0.0
    %1299 = vmatpush2.msra.mxu0 0.0
    %1300 = vmatprep.subr.mxu0 0.0
    %1301 = vmatpush2.msra.mxu0 0.0
    %1302 = vmatprep.subr.mxu0 0.0
    %1303 = vmatpush2.msra.mxu0 0.0
    %1304 = vmatprep.subr.mxu0 0.0
    %1305 = vmatpush2.msra.mxu0 0.0
    %1306 = vmatprep.subr.mxu0 0.0
    %1307 = vmatpush2.msra.mxu0 0.0
    %1308 = vmatprep.subr.mxu0 0.0
    %1309 = vmatpush2.msra.mxu0 0.0
    %1310 = vmatprep.subr.mxu0 0.0
    %1311 = vmatpush2.msra.mxu0 0.0
    %1312 = vmatprep.subr.mxu0 0.0
    %1313 = vmatpush2.msra.mxu0 0.0
    %1314 = vmatprep.subr.mxu0 0.0
    %1315 = vmatpush2.msra.mxu0 0.0
    %1316 = vmatprep.subr.mxu0 0.0
    %1317 = vmatpush2.msra.mxu0 0.0
    %1318 = vmatprep.subr.mxu0 0.0
    %1319 = vmatpush2.msra.mxu0 0.0
    %1320 = vmatprep.subr.mxu0 0.0
    %1321 = vmatpush2.msra.mxu0 0.0
    %1322 = vmatprep.subr.mxu0 0.0
    %1323 = vmatpush2.msra.mxu0 0.0
    %1324 = vmatprep.subr.mxu0 0.0
    %1325 = vmatpush2.msra.mxu0 0.0
    %1326 = vmatprep.subr.mxu0 0.0
    %1327 = vmatpush2.msra.mxu0 0.0
    %1328 = vmatprep.subr.mxu0 0.0
    %1329 = vmatpush2.msra.mxu0 0.0
    %1330 = vmatprep.mubr.f32.mxu0 0.0
    %1331 = vmatmul.mubr.f32.gmra.mxu0 %v1186
    %v1332 = vpop.f32.mrf.mxu0
    %v1333 = vadd.f32 0.0, %v1332
    %v1334 = vpop.f32.mrf.mxu0
    %1335 = vmatprep.mubr.f32.mxu0 0.0
    %1336 = vmatmul.mubr.f32.gmra.mxu0 %v1189
    %v1337 = vpop.f32.mrf.mxu0
    %v1338 = vadd.f32 0.0, %v1337
    %v1339 = vpop.f32.mrf.mxu0
    %1340 = vdwg.mxu0
    %v1341 = vmax.f32 %v1258, %v1333
    %v1342 = vmax.f32 %v1263, %v1338
    %1343 = vmatprep.subr.mxu0 0.0
    %1344 = vmatpush1.msra.mxu0 0.0
    %1345 = vmatprep.subr.mxu0 0.0
    %1346 = vmatpush1.msra.mxu0 0.0
    %1347 = vmatprep.subr.mxu0 0.0
    %1348 = vmatpush1.msra.mxu0 0.0
    %1349 = vmatprep.subr.mxu0 0.0
    %1350 = vmatpush1.msra.mxu0 0.0
    %1351 = vmatprep.subr.mxu0 0.0
    %1352 = vmatpush1.msra.mxu0 0.0
    %1353 = vmatprep.subr.mxu0 0.0
    %1354 = vmatpush1.msra.mxu0 0.0
    %1355 = vmatprep.subr.mxu0 0.0
    %1356 = vmatpush1.msra.mxu0 0.0
    %1357 = vmatprep.subr.mxu0 0.0
    %1358 = vmatpush1.msra.mxu0 0.0
    %1359 = vmatprep.subr.mxu0 0.0
    %1360 = vmatpush1.msra.mxu0 0.0
    %1361 = vmatprep.subr.mxu0 0.0
    %1362 = vmatpush1.msra.mxu0 0.0
    %1363 = vmatprep.subr.mxu0 0.0
    %1364 = vmatpush1.msra.mxu0 0.0
    %1365 = vmatprep.subr.mxu0 0.0
    %1366 = vmatpush1.msra.mxu0 0.0
    %1367 = vmatprep.subr.mxu0 0.0
    %1368 = vmatpush1.msra.mxu0 0.0
    %1369 = vmatprep.subr.mxu0 0.0
    %1370 = vmatpush1.msra.mxu0 0.0
    %1371 = vmatprep.subr.mxu0 0.0
    %1372 = vmatpush1.msra.mxu0 %v47
    %1373 = vmatprep.subr.mxu0 0.0
    %1374 = vmatpush1.msra.mxu0 %v46
    %1375 = vmatprep.subr.mxu0 0.0
    %1376 = vmatpush2.msra.mxu0 0.0
    %1377 = vmatprep.subr.mxu0 0.0
    %1378 = vmatpush2.msra.mxu0 0.0
    %1379 = vmatprep.subr.mxu0 0.0
    %1380 = vmatpush2.msra.mxu0 0.0
    %1381 = vmatprep.subr.mxu0 0.0
    %1382 = vmatpush2.msra.mxu0 0.0
    %1383 = vmatprep.subr.mxu0 0.0
    %1384 = vmatpush2.msra.mxu0 0.0
    %1385 = vmatprep.subr.mxu0 0.0
    %1386 = vmatpush2.msra.mxu0 0.0
    %1387 = vmatprep.subr.mxu0 0.0
    %1388 = vmatpush2.msra.mxu0 0.0
    %1389 = vmatprep.subr.mxu0 0.0
    %1390 = vmatpush2.msra.mxu0 0.0
    %1391 = vmatprep.subr.mxu0 0.0
    %1392 = vmatpush2.msra.mxu0 0.0
    %1393 = vmatprep.subr.mxu0 0.0
    %1394 = vmatpush2.msra.mxu0 0.0
    %1395 = vmatprep.subr.mxu0 0.0
    %1396 = vmatpush2.msra.mxu0 0.0
    %1397 = vmatprep.subr.mxu0 0.0
    %1398 = vmatpush2.msra.mxu0 0.0
    %1399 = vmatprep.subr.mxu0 0.0
    %1400 = vmatpush2.msra.mxu0 0.0
    %1401 = vmatprep.subr.mxu0 0.0
    %1402 = vmatpush2.msra.mxu0 0.0
    %1403 = vmatprep.subr.mxu0 0.0
    %1404 = vmatpush2.msra.mxu0 0.0
    %1405 = vmatprep.subr.mxu0 0.0
    %1406 = vmatpush2.msra.mxu0 0.0
    %1407 = vmatprep.mubr.f32.mxu0 0.0
    %1408 = vmatmul.mubr.f32.gmra.mxu0 %v1186
    %v1409 = vpop.f32.mrf.mxu0
    %v1410 = vadd.f32 0.0, %v1409
    %v1411 = vpop.f32.mrf.mxu0
    %1412 = vmatprep.mubr.f32.mxu0 0.0
    %1413 = vmatmul.mubr.f32.gmra.mxu0 %v1189
    %v1414 = vpop.f32.mrf.mxu0
    %v1415 = vadd.f32 0.0, %v1414
    %v1416 = vpop.f32.mrf.mxu0
    %1417 = vdwg.mxu0
    %v1418 = vmax.f32 %v1341, %v1410
    %v1419 = vmax.f32 %v1342, %v1415
    %v1420 = vsel %vm286, %v1418, -inf
    %v1421 = vrot.slane %v1420, 4
    %v1422 = vmax.f32 %v1420, %v1421
    %v1423 = vrot.slane %v1422, 2
    %v1424 = vmax.f32 %v1422, %v1423
    %v1425 = vrot.slane %v1424, 1
    %v1426 = vmax.f32 %v1424, %v1425
    %v1427 = vsel %vm294, %v1418, -inf
    %v1428 = vrot.slane %v1427, 4
    %v1429 = vmax.f32 %v1427, %v1428
    %v1430 = vrot.slane %v1429, 2
    %v1431 = vmax.f32 %v1429, %v1430
    %v1432 = vrot.slane %v1431, 1
    %v1433 = vmax.f32 %v1431, %v1432
    %v1434 = vsel %vm302, %v1418, -inf
    %v1435 = vsel %vm304, %v1419, -inf
    %v1436 = vmax.f32 %v1434, %v1435
    %v1437 = vrot.slane %v1436, 4
    %v1438 = vmax.f32 %v1436, %v1437
    %v1439 = vrot.slane %v1438, 2
    %v1440 = vmax.f32 %v1438, %v1439
    %v1441 = vrot.slane %v1440, 1
    %v1442 = vmax.f32 %v1440, %v1441
    %v1443 = vsel %vm313, %v1419, -inf
    %v1444 = vrot.slane %v1443, 4
    %v1445 = vmax.f32 %v1443, %v1444
    %v1446 = vrot.slane %v1445, 2
    %v1447 = vmax.f32 %v1445, %v1446
    %v1448 = vrot.slane %v1447, 1
    %v1449 = vmax.f32 %v1447, %v1448
    %v1450 = vsel %vm321, %v1419, -inf
    %v1451 = vrot.slane %v1450, 4
    %v1452 = vmax.f32 %v1450, %v1451
    %v1453 = vrot.slane %v1452, 2
    %v1454 = vmax.f32 %v1452, %v1453
    %v1455 = vrot.slane %v1454, 1
    %v1456 = vmax.f32 %v1454, %v1455
    %v1457 = vsel %vm329, %v1426, %v1433
    %v1458 = vsel %vm331, %v1457, %v1442
    %v1459 = vsel %vm333, %v1458, %v1449
    %v1460 = vsel %vm335, %v1459, %v1456
    %s1461 = scalar_lea.vmem %s1, 32
    %1462 = vst.msk [vmem:[%s1461] sm:$0x1f] %vm337, %v1460
    %s1463 = scalar_lea.vmem [#allocation2], 80
    %v1464 = vld [vmem:[%s1463] sm:$0xff]
    %v1465 = vld [vmem:[%s1463 + $0x8] sm:$0xff]
    %v1467 = vsel %vm50, %v1464, 0
    %v1470 = vsel %vm50, %v1465, 0
    %1472 = vmatprep.subr.mxu0 0.0
    %1473 = vmatpush1.msra.mxu0 0.0
    %1474 = vmatprep.subr.mxu0 0.0
    %1475 = vmatpush1.msra.mxu0 0.0
    %1476 = vmatprep.subr.mxu0 0.0
    %1477 = vmatpush1.msra.mxu0 0.0
    %1478 = vmatprep.subr.mxu0 0.0
    %1479 = vmatpush1.msra.mxu0 0.0
    %1480 = vmatprep.subr.mxu0 0.0
    %1481 = vmatpush1.msra.mxu0 0.0
    %1482 = vmatprep.subr.mxu0 0.0
    %1483 = vmatpush1.msra.mxu0 0.0
    %1484 = vmatprep.subr.mxu0 0.0
    %1485 = vmatpush1.msra.mxu0 0.0
    %1486 = vmatprep.subr.mxu0 0.0
    %1487 = vmatpush1.msra.mxu0 0.0
    %1488 = vmatprep.subr.mxu0 0.0
    %1489 = vmatpush1.msra.mxu0 0.0
    %1490 = vmatprep.subr.mxu0 0.0
    %1491 = vmatpush1.msra.mxu0 0.0
    %1492 = vmatprep.subr.mxu0 0.0
    %1493 = vmatpush1.msra.mxu0 0.0
    %1494 = vmatprep.subr.mxu0 0.0
    %1495 = vmatpush1.msra.mxu0 0.0
    %1496 = vmatprep.subr.mxu0 0.0
    %1497 = vmatpush1.msra.mxu0 0.0
    %1498 = vmatprep.subr.mxu0 0.0
    %1499 = vmatpush1.msra.mxu0 0.0
    %1500 = vmatprep.subr.mxu0 0.0
    %1501 = vmatpush1.msra.mxu0 %v33
    %1502 = vmatprep.subr.mxu0 0.0
    %1503 = vmatpush1.msra.mxu0 %v32
    %1504 = vmatprep.subr.mxu0 0.0
    %1505 = vmatpush2.msra.mxu0 0.0
    %1506 = vmatprep.subr.mxu0 0.0
    %1507 = vmatpush2.msra.mxu0 0.0
    %1508 = vmatprep.subr.mxu0 0.0
    %1509 = vmatpush2.msra.mxu0 0.0
    %1510 = vmatprep.subr.mxu0 0.0
    %1511 = vmatpush2.msra.mxu0 0.0
    %1512 = vmatprep.subr.mxu0 0.0
    %1513 = vmatpush2.msra.mxu0 0.0
    %1514 = vmatprep.subr.mxu0 0.0
    %1515 = vmatpush2.msra.mxu0 0.0
    %1516 = vmatprep.subr.mxu0 0.0
    %1517 = vmatpush2.msra.mxu0 0.0
    %1518 = vmatprep.subr.mxu0 0.0
    %1519 = vmatpush2.msra.mxu0 0.0
    %1520 = vmatprep.subr.mxu0 0.0
    %1521 = vmatpush2.msra.mxu0 0.0
    %1522 = vmatprep.subr.mxu0 0.0
    %1523 = vmatpush2.msra.mxu0 0.0
    %1524 = vmatprep.subr.mxu0 0.0
    %1525 = vmatpush2.msra.mxu0 0.0
    %1526 = vmatprep.subr.mxu0 0.0
    %1527 = vmatpush2.msra.mxu0 0.0
    %1528 = vmatprep.subr.mxu0 0.0
    %1529 = vmatpush2.msra.mxu0 0.0
    %1530 = vmatprep.subr.mxu0 0.0
    %1531 = vmatpush2.msra.mxu0 0.0
    %1532 = vmatprep.subr.mxu0 0.0
    %1533 = vmatpush2.msra.mxu0 0.0
    %1534 = vmatprep.subr.mxu0 0.0
    %1535 = vmatpush2.msra.mxu0 0.0
    %1536 = vmatprep.mubr.f32.mxu0 0.0
    %1537 = vmatmul.mubr.f32.gmra.mxu0 %v1467
    %v1538 = vpop.f32.mrf.mxu0
    %v1539 = vadd.f32 0.0, %v1538
    %v1540 = vpop.f32.mrf.mxu0
    %1541 = vmatprep.mubr.f32.mxu0 0.0
    %1542 = vmatmul.mubr.f32.gmra.mxu0 %v1470
    %v1543 = vpop.f32.mrf.mxu0
    %v1544 = vadd.f32 0.0, %v1543
    %v1545 = vpop.f32.mrf.mxu0
    %1546 = vdwg.mxu0
    %1547 = vmatprep.subr.mxu0 0.0
    %1548 = vmatpush1.msra.mxu0 0.0
    %1549 = vmatprep.subr.mxu0 0.0
    %1550 = vmatpush1.msra.mxu0 0.0
    %1551 = vmatprep.subr.mxu0 0.0
    %1552 = vmatpush1.msra.mxu0 0.0
    %1553 = vmatprep.subr.mxu0 0.0
    %1554 = vmatpush1.msra.mxu0 0.0
    %1555 = vmatprep.subr.mxu0 0.0
    %1556 = vmatpush1.msra.mxu0 0.0
    %1557 = vmatprep.subr.mxu0 0.0
    %1558 = vmatpush1.msra.mxu0 0.0
    %1559 = vmatprep.subr.mxu0 0.0
    %1560 = vmatpush1.msra.mxu0 0.0
    %1561 = vmatprep.subr.mxu0 0.0
    %1562 = vmatpush1.msra.mxu0 0.0
    %1563 = vmatprep.subr.mxu0 0.0
    %1564 = vmatpush1.msra.mxu0 0.0
    %1565 = vmatprep.subr.mxu0 0.0
    %1566 = vmatpush1.msra.mxu0 0.0
    %1567 = vmatprep.subr.mxu0 0.0
    %1568 = vmatpush1.msra.mxu0 0.0
    %1569 = vmatprep.subr.mxu0 0.0
    %1570 = vmatpush1.msra.mxu0 0.0
    %1571 = vmatprep.subr.mxu0 0.0
    %1572 = vmatpush1.msra.mxu0 0.0
    %1573 = vmatprep.subr.mxu0 0.0
    %1574 = vmatpush1.msra.mxu0 0.0
    %1575 = vmatprep.subr.mxu0 0.0
    %1576 = vmatpush1.msra.mxu0 %v40
    %1577 = vmatprep.subr.mxu0 0.0
    %1578 = vmatpush1.msra.mxu0 %v39
    %1579 = vmatprep.subr.mxu0 0.0
    %1580 = vmatpush2.msra.mxu0 0.0
    %1581 = vmatprep.subr.mxu0 0.0
    %1582 = vmatpush2.msra.mxu0 0.0
    %1583 = vmatprep.subr.mxu0 0.0
    %1584 = vmatpush2.msra.mxu0 0.0
    %1585 = vmatprep.subr.mxu0 0.0
    %1586 = vmatpush2.msra.mxu0 0.0
    %1587 = vmatprep.subr.mxu0 0.0
    %1588 = vmatpush2.msra.mxu0 0.0
    %1589 = vmatprep.subr.mxu0 0.0
    %1590 = vmatpush2.msra.mxu0 0.0
    %1591 = vmatprep.subr.mxu0 0.0
    %1592 = vmatpush2.msra.mxu0 0.0
    %1593 = vmatprep.subr.mxu0 0.0
    %1594 = vmatpush2.msra.mxu0 0.0
    %1595 = vmatprep.subr.mxu0 0.0
    %1596 = vmatpush2.msra.mxu0 0.0
    %1597 = vmatprep.subr.mxu0 0.0
    %1598 = vmatpush2.msra.mxu0 0.0
    %1599 = vmatprep.subr.mxu0 0.0
    %1600 = vmatpush2.msra.mxu0 0.0
    %1601 = vmatprep.subr.mxu0 0.0
    %1602 = vmatpush2.msra.mxu0 0.0
    %1603 = vmatprep.subr.mxu0 0.0
    %1604 = vmatpush2.msra.mxu0 0.0
    %1605 = vmatprep.subr.mxu0 0.0
    %1606 = vmatpush2.msra.mxu0 0.0
    %1607 = vmatprep.subr.mxu0 0.0
    %1608 = vmatpush2.msra.mxu0 0.0
    %1609 = vmatprep.subr.mxu0 0.0
    %1610 = vmatpush2.msra.mxu0 0.0
    %1611 = vmatprep.mubr.f32.mxu0 0.0
    %1612 = vmatmul.mubr.f32.gmra.mxu0 %v1467
    %v1613 = vpop.f32.mrf.mxu0
    %v1614 = vadd.f32 0.0, %v1613
    %v1615 = vpop.f32.mrf.mxu0
    %1616 = vmatprep.mubr.f32.mxu0 0.0
    %1617 = vmatmul.mubr.f32.gmra.mxu0 %v1470
    %v1618 = vpop.f32.mrf.mxu0
    %v1619 = vadd.f32 0.0, %v1618
    %v1620 = vpop.f32.mrf.mxu0
    %1621 = vdwg.mxu0
    %v1622 = vmax.f32 %v1539, %v1614
    %v1623 = vmax.f32 %v1544, %v1619
    %1624 = vmatprep.subr.mxu0 0.0
    %1625 = vmatpush1.msra.mxu0 0.0
    %1626 = vmatprep.subr.mxu0 0.0
    %1627 = vmatpush1.msra.mxu0 0.0
    %1628 = vmatprep.subr.mxu0 0.0
    %1629 = vmatpush1.msra.mxu0 0.0
    %1630 = vmatprep.subr.mxu0 0.0
    %1631 = vmatpush1.msra.mxu0 0.0
    %1632 = vmatprep.subr.mxu0 0.0
    %1633 = vmatpush1.msra.mxu0 0.0
    %1634 = vmatprep.subr.mxu0 0.0
    %1635 = vmatpush1.msra.mxu0 0.0
    %1636 = vmatprep.subr.mxu0 0.0
    %1637 = vmatpush1.msra.mxu0 0.0
    %1638 = vmatprep.subr.mxu0 0.0
    %1639 = vmatpush1.msra.mxu0 0.0
    %1640 = vmatprep.subr.mxu0 0.0
    %1641 = vmatpush1.msra.mxu0 0.0
    %1642 = vmatprep.subr.mxu0 0.0
    %1643 = vmatpush1.msra.mxu0 0.0
    %1644 = vmatprep.subr.mxu0 0.0
    %1645 = vmatpush1.msra.mxu0 0.0
    %1646 = vmatprep.subr.mxu0 0.0
    %1647 = vmatpush1.msra.mxu0 0.0
    %1648 = vmatprep.subr.mxu0 0.0
    %1649 = vmatpush1.msra.mxu0 0.0
    %1650 = vmatprep.subr.mxu0 0.0
    %1651 = vmatpush1.msra.mxu0 0.0
    %1652 = vmatprep.subr.mxu0 0.0
    %1653 = vmatpush1.msra.mxu0 %v47
    %1654 = vmatprep.subr.mxu0 0.0
    %1655 = vmatpush1.msra.mxu0 %v46
    %1656 = vmatprep.subr.mxu0 0.0
    %1657 = vmatpush2.msra.mxu0 0.0
    %1658 = vmatprep.subr.mxu0 0.0
    %1659 = vmatpush2.msra.mxu0 0.0
    %1660 = vmatprep.subr.mxu0 0.0
    %1661 = vmatpush2.msra.mxu0 0.0
    %1662 = vmatprep.subr.mxu0 0.0
    %1663 = vmatpush2.msra.mxu0 0.0
    %1664 = vmatprep.subr.mxu0 0.0
    %1665 = vmatpush2.msra.mxu0 0.0
    %1666 = vmatprep.subr.mxu0 0.0
    %1667 = vmatpush2.msra.mxu0 0.0
    %1668 = vmatprep.subr.mxu0 0.0
    %1669 = vmatpush2.msra.mxu0 0.0
    %1670 = vmatprep.subr.mxu0 0.0
    %1671 = vmatpush2.msra.mxu0 0.0
    %1672 = vmatprep.subr.mxu0 0.0
    %1673 = vmatpush2.msra.mxu0 0.0
    %1674 = vmatprep.subr.mxu0 0.0
    %1675 = vmatpush2.msra.mxu0 0.0
    %1676 = vmatprep.subr.mxu0 0.0
    %1677 = vmatpush2.msra.mxu0 0.0
    %1678 = vmatprep.subr.mxu0 0.0
    %1679 = vmatpush2.msra.mxu0 0.0
    %1680 = vmatprep.subr.mxu0 0.0
    %1681 = vmatpush2.msra.mxu0 0.0
    %1682 = vmatprep.subr.mxu0 0.0
    %1683 = vmatpush2.msra.mxu0 0.0
    %1684 = vmatprep.subr.mxu0 0.0
    %1685 = vmatpush2.msra.mxu0 0.0
    %1686 = vmatprep.subr.mxu0 0.0
    %1687 = vmatpush2.msra.mxu0 0.0
    %1688 = vmatprep.mubr.f32.mxu0 0.0
    %1689 = vmatmul.mubr.f32.gmra.mxu0 %v1467
    %v1690 = vpop.f32.mrf.mxu0
    %v1691 = vadd.f32 0.0, %v1690
    %v1692 = vpop.f32.mrf.mxu0
    %1693 = vmatprep.mubr.f32.mxu0 0.0
    %1694 = vmatmul.mubr.f32.gmra.mxu0 %v1470
    %v1695 = vpop.f32.mrf.mxu0
    %v1696 = vadd.f32 0.0, %v1695
    %v1697 = vpop.f32.mrf.mxu0
    %1698 = vdwg.mxu0
    %v1699 = vmax.f32 %v1622, %v1691
    %v1700 = vmax.f32 %v1623, %v1696
    %v1701 = vsel %vm286, %v1699, -inf
    %v1702 = vrot.slane %v1701, 4
    %v1703 = vmax.f32 %v1701, %v1702
    %v1704 = vrot.slane %v1703, 2
    %v1705 = vmax.f32 %v1703, %v1704
    %v1706 = vrot.slane %v1705, 1
    %v1707 = vmax.f32 %v1705, %v1706
    %v1708 = vsel %vm294, %v1699, -inf
    %v1709 = vrot.slane %v1708, 4
    %v1710 = vmax.f32 %v1708, %v1709
    %v1711 = vrot.slane %v1710, 2
    %v1712 = vmax.f32 %v1710, %v1711
    %v1713 = vrot.slane %v1712, 1
    %v1714 = vmax.f32 %v1712, %v1713
    %v1715 = vsel %vm302, %v1699, -inf
    %v1716 = vsel %vm304, %v1700, -inf
    %v1717 = vmax.f32 %v1715, %v1716
    %v1718 = vrot.slane %v1717, 4
    %v1719 = vmax.f32 %v1717, %v1718
    %v1720 = vrot.slane %v1719, 2
    %v1721 = vmax.f32 %v1719, %v1720
    %v1722 = vrot.slane %v1721, 1
    %v1723 = vmax.f32 %v1721, %v1722
    %v1724 = vsel %vm313, %v1700, -inf
    %v1725 = vrot.slane %v1724, 4
    %v1726 = vmax.f32 %v1724, %v1725
    %v1727 = vrot.slane %v1726, 2
    %v1728 = vmax.f32 %v1726, %v1727
    %v1729 = vrot.slane %v1728, 1
    %v1730 = vmax.f32 %v1728, %v1729
    %v1731 = vsel %vm321, %v1700, -inf
    %v1732 = vrot.slane %v1731, 4
    %v1733 = vmax.f32 %v1731, %v1732
    %v1734 = vrot.slane %v1733, 2
    %v1735 = vmax.f32 %v1733, %v1734
    %v1736 = vrot.slane %v1735, 1
    %v1737 = vmax.f32 %v1735, %v1736
    %v1738 = vsel %vm329, %v1707, %v1714
    %v1739 = vsel %vm331, %v1738, %v1723
    %v1740 = vsel %vm333, %v1739, %v1730
    %v1741 = vsel %vm335, %v1740, %v1737
    %s1742 = scalar_lea.vmem %s1, 40
    %1743 = vst.msk [vmem:[%s1742] sm:$0x1f] %vm337, %v1741
    %s1744 = scalar_lea.vmem [#allocation2], 96
    %v1745 = vld [vmem:[%s1744] sm:$0xff]
    %v1746 = vld [vmem:[%s1744 + $0x8] sm:$0xff]
    %v1748 = vsel %vm50, %v1745, 0
    %v1751 = vsel %vm50, %v1746, 0
    %1753 = vmatprep.subr.mxu0 0.0
    %1754 = vmatpush1.msra.mxu0 0.0
    %1755 = vmatprep.subr.mxu0 0.0
    %1756 = vmatpush1.msra.mxu0 0.0
    %1757 = vmatprep.subr.mxu0 0.0
    %1758 = vmatpush1.msra.mxu0 0.0
    %1759 = vmatprep.subr.mxu0 0.0
    %1760 = vmatpush1.msra.mxu0 0.0
    %1761 = vmatprep.subr.mxu0 0.0
    %1762 = vmatpush1.msra.mxu0 0.0
    %1763 = vmatprep.subr.mxu0 0.0
    %1764 = vmatpush1.msra.mxu0 0.0
    %1765 = vmatprep.subr.mxu0 0.0
    %1766 = vmatpush1.msra.mxu0 0.0
    %1767 = vmatprep.subr.mxu0 0.0
    %1768 = vmatpush1.msra.mxu0 0.0
    %1769 = vmatprep.subr.mxu0 0.0
    %1770 = vmatpush1.msra.mxu0 0.0
    %1771 = vmatprep.subr.mxu0 0.0
    %1772 = vmatpush1.msra.mxu0 0.0
    %1773 = vmatprep.subr.mxu0 0.0
    %1774 = vmatpush1.msra.mxu0 0.0
    %1775 = vmatprep.subr.mxu0 0.0
    %1776 = vmatpush1.msra.mxu0 0.0
    %1777 = vmatprep.subr.mxu0 0.0
    %1778 = vmatpush1.msra.mxu0 0.0
    %1779 = vmatprep.subr.mxu0 0.0
    %1780 = vmatpush1.msra.mxu0 0.0
    %1781 = vmatprep.subr.mxu0 0.0
    %1782 = vmatpush1.msra.mxu0 %v33
    %1783 = vmatprep.subr.mxu0 0.0
    %1784 = vmatpush1.msra.mxu0 %v32
    %1785 = vmatprep.subr.mxu0 0.0
    %1786 = vmatpush2.msra.mxu0 0.0
    %1787 = vmatprep.subr.mxu0 0.0
    %1788 = vmatpush2.msra.mxu0 0.0
    %1789 = vmatprep.subr.mxu0 0.0
    %1790 = vmatpush2.msra.mxu0 0.0
    %1791 = vmatprep.subr.mxu0 0.0
    %1792 = vmatpush2.msra.mxu0 0.0
    %1793 = vmatprep.subr.mxu0 0.0
    %1794 = vmatpush2.msra.mxu0 0.0
    %1795 = vmatprep.subr.mxu0 0.0
    %1796 = vmatpush2.msra.mxu0 0.0
    %1797 = vmatprep.subr.mxu0 0.0
    %1798 = vmatpush2.msra.mxu0 0.0
    %1799 = vmatprep.subr.mxu0 0.0
    %1800 = vmatpush2.msra.mxu0 0.0
    %1801 = vmatprep.subr.mxu0 0.0
    %1802 = vmatpush2.msra.mxu0 0.0
    %1803 = vmatprep.subr.mxu0 0.0
    %1804 = vmatpush2.msra.mxu0 0.0
    %1805 = vmatprep.subr.mxu0 0.0
    %1806 = vmatpush2.msra.mxu0 0.0
    %1807 = vmatprep.subr.mxu0 0.0
    %1808 = vmatpush2.msra.mxu0 0.0
    %1809 = vmatprep.subr.mxu0 0.0
    %1810 = vmatpush2.msra.mxu0 0.0
    %1811 = vmatprep.subr.mxu0 0.0
    %1812 = vmatpush2.msra.mxu0 0.0
    %1813 = vmatprep.subr.mxu0 0.0
    %1814 = vmatpush2.msra.mxu0 0.0
    %1815 = vmatprep.subr.mxu0 0.0
    %1816 = vmatpush2.msra.mxu0 0.0
    %1817 = vmatprep.mubr.f32.mxu0 0.0
    %1818 = vmatmul.mubr.f32.gmra.mxu0 %v1748
    %v1819 = vpop.f32.mrf.mxu0
    %v1820 = vadd.f32 0.0, %v1819
    %v1821 = vpop.f32.mrf.mxu0
    %1822 = vmatprep.mubr.f32.mxu0 0.0
    %1823 = vmatmul.mubr.f32.gmra.mxu0 %v1751
    %v1824 = vpop.f32.mrf.mxu0
    %v1825 = vadd.f32 0.0, %v1824
    %v1826 = vpop.f32.mrf.mxu0
    %1827 = vdwg.mxu0
    %1828 = vmatprep.subr.mxu0 0.0
    %1829 = vmatpush1.msra.mxu0 0.0
    %1830 = vmatprep.subr.mxu0 0.0
    %1831 = vmatpush1.msra.mxu0 0.0
    %1832 = vmatprep.subr.mxu0 0.0
    %1833 = vmatpush1.msra.mxu0 0.0
    %1834 = vmatprep.subr.mxu0 0.0
    %1835 = vmatpush1.msra.mxu0 0.0
    %1836 = vmatprep.subr.mxu0 0.0
    %1837 = vmatpush1.msra.mxu0 0.0
    %1838 = vmatprep.subr.mxu0 0.0
    %1839 = vmatpush1.msra.mxu0 0.0
    %1840 = vmatprep.subr.mxu0 0.0
    %1841 = vmatpush1.msra.mxu0 0.0
    %1842 = vmatprep.subr.mxu0 0.0
    %1843 = vmatpush1.msra.mxu0 0.0
    %1844 = vmatprep.subr.mxu0 0.0
    %1845 = vmatpush1.msra.mxu0 0.0
    %1846 = vmatprep.subr.mxu0 0.0
    %1847 = vmatpush1.msra.mxu0 0.0
    %1848 = vmatprep.subr.mxu0 0.0
    %1849 = vmatpush1.msra.mxu0 0.0
    %1850 = vmatprep.subr.mxu0 0.0
    %1851 = vmatpush1.msra.mxu0 0.0
    %1852 = vmatprep.subr.mxu0 0.0
    %1853 = vmatpush1.msra.mxu0 0.0
    %1854 = vmatprep.subr.mxu0 0.0
    %1855 = vmatpush1.msra.mxu0 0.0
    %1856 = vmatprep.subr.mxu0 0.0
    %1857 = vmatpush1.msra.mxu0 %v40
    %1858 = vmatprep.subr.mxu0 0.0
    %1859 = vmatpush1.msra.mxu0 %v39
    %1860 = vmatprep.subr.mxu0 0.0
    %1861 = vmatpush2.msra.mxu0 0.0
    %1862 = vmatprep.subr.mxu0 0.0
    %1863 = vmatpush2.msra.mxu0 0.0
    %1864 = vmatprep.subr.mxu0 0.0
    %1865 = vmatpush2.msra.mxu0 0.0
    %1866 = vmatprep.subr.mxu0 0.0
    %1867 = vmatpush2.msra.mxu0 0.0
    %1868 = vmatprep.subr.mxu0 0.0
    %1869 = vmatpush2.msra.mxu0 0.0
    %1870 = vmatprep.subr.mxu0 0.0
    %1871 = vmatpush2.msra.mxu0 0.0
    %1872 = vmatprep.subr.mxu0 0.0
    %1873 = vmatpush2.msra.mxu0 0.0
    %1874 = vmatprep.subr.mxu0 0.0
    %1875 = vmatpush2.msra.mxu0 0.0
    %1876 = vmatprep.subr.mxu0 0.0
    %1877 = vmatpush2.msra.mxu0 0.0
    %1878 = vmatprep.subr.mxu0 0.0
    %1879 = vmatpush2.msra.mxu0 0.0
    %1880 = vmatprep.subr.mxu0 0.0
    %1881 = vmatpush2.msra.mxu0 0.0
    %1882 = vmatprep.subr.mxu0 0.0
    %1883 = vmatpush2.msra.mxu0 0.0
    %1884 = vmatprep.subr.mxu0 0.0
    %1885 = vmatpush2.msra.mxu0 0.0
    %1886 = vmatprep.subr.mxu0 0.0
    %1887 = vmatpush2.msra.mxu0 0.0
    %1888 = vmatprep.subr.mxu0 0.0
    %1889 = vmatpush2.msra.mxu0 0.0
    %1890 = vmatprep.subr.mxu0 0.0
    %1891 = vmatpush2.msra.mxu0 0.0
    %1892 = vmatprep.mubr.f32.mxu0 0.0
    %1893 = vmatmul.mubr.f32.gmra.mxu0 %v1748
    %v1894 = vpop.f32.mrf.mxu0
    %v1895 = vadd.f32 0.0, %v1894
    %v1896 = vpop.f32.mrf.mxu0
    %1897 = vmatprep.mubr.f32.mxu0 0.0
    %1898 = vmatmul.mubr.f32.gmra.mxu0 %v1751
    %v1899 = vpop.f32.mrf.mxu0
    %v1900 = vadd.f32 0.0, %v1899
    %v1901 = vpop.f32.mrf.mxu0
    %1902 = vdwg.mxu0
    %v1903 = vmax.f32 %v1820, %v1895
    %v1904 = vmax.f32 %v1825, %v1900
    %1905 = vmatprep.subr.mxu0 0.0
    %1906 = vmatpush1.msra.mxu0 0.0
    %1907 = vmatprep.subr.mxu0 0.0
    %1908 = vmatpush1.msra.mxu0 0.0
    %1909 = vmatprep.subr.mxu0 0.0
    %1910 = vmatpush1.msra.mxu0 0.0
    %1911 = vmatprep.subr.mxu0 0.0
    %1912 = vmatpush1.msra.mxu0 0.0
    %1913 = vmatprep.subr.mxu0 0.0
    %1914 = vmatpush1.msra.mxu0 0.0
    %1915 = vmatprep.subr.mxu0 0.0
    %1916 = vmatpush1.msra.mxu0 0.0
    %1917 = vmatprep.subr.mxu0 0.0
    %1918 = vmatpush1.msra.mxu0 0.0
    %1919 = vmatprep.subr.mxu0 0.0
    %1920 = vmatpush1.msra.mxu0 0.0
    %1921 = vmatprep.subr.mxu0 0.0
    %1922 = vmatpush1.msra.mxu0 0.0
    %1923 = vmatprep.subr.mxu0 0.0
    %1924 = vmatpush1.msra.mxu0 0.0
    %1925 = vmatprep.subr.mxu0 0.0
    %1926 = vmatpush1.msra.mxu0 0.0
    %1927 = vmatprep.subr.mxu0 0.0
    %1928 = vmatpush1.msra.mxu0 0.0
    %1929 = vmatprep.subr.mxu0 0.0
    %1930 = vmatpush1.msra.mxu0 0.0
    %1931 = vmatprep.subr.mxu0 0.0
    %1932 = vmatpush1.msra.mxu0 0.0
    %1933 = vmatprep.subr.mxu0 0.0
    %1934 = vmatpush1.msra.mxu0 %v47
    %1935 = vmatprep.subr.mxu0 0.0
    %1936 = vmatpush1.msra.mxu0 %v46
    %1937 = vmatprep.subr.mxu0 0.0
    %1938 = vmatpush2.msra.mxu0 0.0
    %1939 = vmatprep.subr.mxu0 0.0
    %1940 = vmatpush2.msra.mxu0 0.0
    %1941 = vmatprep.subr.mxu0 0.0
    %1942 = vmatpush2.msra.mxu0 0.0
    %1943 = vmatprep.subr.mxu0 0.0
    %1944 = vmatpush2.msra.mxu0 0.0
    %1945 = vmatprep.subr.mxu0 0.0
    %1946 = vmatpush2.msra.mxu0 0.0
    %1947 = vmatprep.subr.mxu0 0.0
    %1948 = vmatpush2.msra.mxu0 0.0
    %1949 = vmatprep.subr.mxu0 0.0
    %1950 = vmatpush2.msra.mxu0 0.0
    %1951 = vmatprep.subr.mxu0 0.0
    %1952 = vmatpush2.msra.mxu0 0.0
    %1953 = vmatprep.subr.mxu0 0.0
    %1954 = vmatpush2.msra.mxu0 0.0
    %1955 = vmatprep.subr.mxu0 0.0
    %1956 = vmatpush2.msra.mxu0 0.0
    %1957 = vmatprep.subr.mxu0 0.0
    %1958 = vmatpush2.msra.mxu0 0.0
    %1959 = vmatprep.subr.mxu0 0.0
    %1960 = vmatpush2.msra.mxu0 0.0
    %1961 = vmatprep.subr.mxu0 0.0
    %1962 = vmatpush2.msra.mxu0 0.0
    %1963 = vmatprep.subr.mxu0 0.0
    %1964 = vmatpush2.msra.mxu0 0.0
    %1965 = vmatprep.subr.mxu0 0.0
    %1966 = vmatpush2.msra.mxu0 0.0
    %1967 = vmatprep.subr.mxu0 0.0
    %1968 = vmatpush2.msra.mxu0 0.0
    %1969 = vmatprep.mubr.f32.mxu0 0.0
    %1970 = vmatmul.mubr.f32.gmra.mxu0 %v1748
    %v1971 = vpop.f32.mrf.mxu0
    %v1972 = vadd.f32 0.0, %v1971
    %v1973 = vpop.f32.mrf.mxu0
    %1974 = vmatprep.mubr.f32.mxu0 0.0
    %1975 = vmatmul.mubr.f32.gmra.mxu0 %v1751
    %v1976 = vpop.f32.mrf.mxu0
    %v1977 = vadd.f32 0.0, %v1976
    %v1978 = vpop.f32.mrf.mxu0
    %1979 = vdwg.mxu0
    %v1980 = vmax.f32 %v1903, %v1972
    %v1981 = vmax.f32 %v1904, %v1977
    %v1982 = vsel %vm286, %v1980, -inf
    %v1983 = vrot.slane %v1982, 4
    %v1984 = vmax.f32 %v1982, %v1983
    %v1985 = vrot.slane %v1984, 2
    %v1986 = vmax.f32 %v1984, %v1985
    %v1987 = vrot.slane %v1986, 1
    %v1988 = vmax.f32 %v1986, %v1987
    %v1989 = vsel %vm294, %v1980, -inf
    %v1990 = vrot.slane %v1989, 4
    %v1991 = vmax.f32 %v1989, %v1990
    %v1992 = vrot.slane %v1991, 2
    %v1993 = vmax.f32 %v1991, %v1992
    %v1994 = vrot.slane %v1993, 1
    %v1995 = vmax.f32 %v1993, %v1994
    %v1996 = vsel %vm302, %v1980, -inf
    %v1997 = vsel %vm304, %v1981, -inf
    %v1998 = vmax.f32 %v1996, %v1997
    %v1999 = vrot.slane %v1998, 4
    %v2000 = vmax.f32 %v1998, %v1999
    %v2001 = vrot.slane %v2000, 2
    %v2002 = vmax.f32 %v2000, %v2001
    %v2003 = vrot.slane %v2002, 1
    %v2004 = vmax.f32 %v2002, %v2003
    %v2005 = vsel %vm313, %v1981, -inf
    %v2006 = vrot.slane %v2005, 4
    %v2007 = vmax.f32 %v2005, %v2006
    %v2008 = vrot.slane %v2007, 2
    %v2009 = vmax.f32 %v2007, %v2008
    %v2010 = vrot.slane %v2009, 1
    %v2011 = vmax.f32 %v2009, %v2010
    %v2012 = vsel %vm321, %v1981, -inf
    %v2013 = vrot.slane %v2012, 4
    %v2014 = vmax.f32 %v2012, %v2013
    %v2015 = vrot.slane %v2014, 2
    %v2016 = vmax.f32 %v2014, %v2015
    %v2017 = vrot.slane %v2016, 1
    %v2018 = vmax.f32 %v2016, %v2017
    %v2019 = vsel %vm329, %v1988, %v1995
    %v2020 = vsel %vm331, %v2019, %v2004
    %v2021 = vsel %vm333, %v2020, %v2011
    %v2022 = vsel %vm335, %v2021, %v2018
    %s2023 = scalar_lea.vmem %s1, 48
    %2024 = vst.msk [vmem:[%s2023] sm:$0x1f] %vm337, %v2022
    %s2025 = scalar_lea.vmem [#allocation2], 112
    %v2026 = vld [vmem:[%s2025] sm:$0xff]
    %v2027 = vld [vmem:[%s2025 + $0x8] sm:$0xff]
    %v2029 = vsel %vm50, %v2026, 0
    %v2032 = vsel %vm50, %v2027, 0
    %2034 = vmatprep.subr.mxu0 0.0
    %2035 = vmatpush1.msra.mxu0 0.0
    %2036 = vmatprep.subr.mxu0 0.0
    %2037 = vmatpush1.msra.mxu0 0.0
    %2038 = vmatprep.subr.mxu0 0.0
    %2039 = vmatpush1.msra.mxu0 0.0
    %2040 = vmatprep.subr.mxu0 0.0
    %2041 = vmatpush1.msra.mxu0 0.0
    %2042 = vmatprep.subr.mxu0 0.0
    %2043 = vmatpush1.msra.mxu0 0.0
    %2044 = vmatprep.subr.mxu0 0.0
    %2045 = vmatpush1.msra.mxu0 0.0
    %2046 = vmatprep.subr.mxu0 0.0
    %2047 = vmatpush1.msra.mxu0 0.0
    %2048 = vmatprep.subr.mxu0 0.0
    %2049 = vmatpush1.msra.mxu0 0.0
    %2050 = vmatprep.subr.mxu0 0.0
    %2051 = vmatpush1.msra.mxu0 0.0
    %2052 = vmatprep.subr.mxu0 0.0
    %2053 = vmatpush1.msra.mxu0 0.0
    %2054 = vmatprep.subr.mxu0 0.0
    %2055 = vmatpush1.msra.mxu0 0.0
    %2056 = vmatprep.subr.mxu0 0.0
    %2057 = vmatpush1.msra.mxu0 0.0
    %2058 = vmatprep.subr.mxu0 0.0
    %2059 = vmatpush1.msra.mxu0 0.0
    %2060 = vmatprep.subr.mxu0 0.0
    %2061 = vmatpush1.msra.mxu0 0.0
    %2062 = vmatprep.subr.mxu0 0.0
    %2063 = vmatpush1.msra.mxu0 %v33
    %2064 = vmatprep.subr.mxu0 0.0
    %2065 = vmatpush1.msra.mxu0 %v32
    %2066 = vmatprep.subr.mxu0 0.0
    %2067 = vmatpush2.msra.mxu0 0.0
    %2068 = vmatprep.subr.mxu0 0.0
    %2069 = vmatpush2.msra.mxu0 0.0
    %2070 = vmatprep.subr.mxu0 0.0
    %2071 = vmatpush2.msra.mxu0 0.0
    %2072 = vmatprep.subr.mxu0 0.0
    %2073 = vmatpush2.msra.mxu0 0.0
    %2074 = vmatprep.subr.mxu0 0.0
    %2075 = vmatpush2.msra.mxu0 0.0
    %2076 = vmatprep.subr.mxu0 0.0
    %2077 = vmatpush2.msra.mxu0 0.0
    %2078 = vmatprep.subr.mxu0 0.0
    %2079 = vmatpush2.msra.mxu0 0.0
    %2080 = vmatprep.subr.mxu0 0.0
    %2081 = vmatpush2.msra.mxu0 0.0
    %2082 = vmatprep.subr.mxu0 0.0
    %2083 = vmatpush2.msra.mxu0 0.0
    %2084 = vmatprep.subr.mxu0 0.0
    %2085 = vmatpush2.msra.mxu0 0.0
    %2086 = vmatprep.subr.mxu0 0.0
    %2087 = vmatpush2.msra.mxu0 0.0
    %2088 = vmatprep.subr.mxu0 0.0
    %2089 = vmatpush2.msra.mxu0 0.0
    %2090 = vmatprep.subr.mxu0 0.0
    %2091 = vmatpush2.msra.mxu0 0.0
    %2092 = vmatprep.subr.mxu0 0.0
    %2093 = vmatpush2.msra.mxu0 0.0
    %2094 = vmatprep.subr.mxu0 0.0
    %2095 = vmatpush2.msra.mxu0 0.0
    %2096 = vmatprep.subr.mxu0 0.0
    %2097 = vmatpush2.msra.mxu0 0.0
    %2098 = vmatprep.mubr.f32.mxu0 0.0
    %2099 = vmatmul.mubr.f32.gmra.mxu0 %v2029
    %v2100 = vpop.f32.mrf.mxu0
    %v2101 = vadd.f32 0.0, %v2100
    %v2102 = vpop.f32.mrf.mxu0
    %2103 = vmatprep.mubr.f32.mxu0 0.0
    %2104 = vmatmul.mubr.f32.gmra.mxu0 %v2032
    %v2105 = vpop.f32.mrf.mxu0
    %v2106 = vadd.f32 0.0, %v2105
    %v2107 = vpop.f32.mrf.mxu0
    %2108 = vdwg.mxu0
    %2109 = vmatprep.subr.mxu0 0.0
    %2110 = vmatpush1.msra.mxu0 0.0
    %2111 = vmatprep.subr.mxu0 0.0
    %2112 = vmatpush1.msra.mxu0 0.0
    %2113 = vmatprep.subr.mxu0 0.0
    %2114 = vmatpush1.msra.mxu0 0.0
    %2115 = vmatprep.subr.mxu0 0.0
    %2116 = vmatpush1.msra.mxu0 0.0
    %2117 = vmatprep.subr.mxu0 0.0
    %2118 = vmatpush1.msra.mxu0 0.0
    %2119 = vmatprep.subr.mxu0 0.0
    %2120 = vmatpush1.msra.mxu0 0.0
    %2121 = vmatprep.subr.mxu0 0.0
    %2122 = vmatpush1.msra.mxu0 0.0
    %2123 = vmatprep.subr.mxu0 0.0
    %2124 = vmatpush1.msra.mxu0 0.0
    %2125 = vmatprep.subr.mxu0 0.0
    %2126 = vmatpush1.msra.mxu0 0.0
    %2127 = vmatprep.subr.mxu0 0.0
    %2128 = vmatpush1.msra.mxu0 0.0
    %2129 = vmatprep.subr.mxu0 0.0
    %2130 = vmatpush1.msra.mxu0 0.0
    %2131 = vmatprep.subr.mxu0 0.0
    %2132 = vmatpush1.msra.mxu0 0.0
    %2133 = vmatprep.subr.mxu0 0.0
    %2134 = vmatpush1.msra.mxu0 0.0
    %2135 = vmatprep.subr.mxu0 0.0
    %2136 = vmatpush1.msra.mxu0 0.0
    %2137 = vmatprep.subr.mxu0 0.0
    %2138 = vmatpush1.msra.mxu0 %v40
    %2139 = vmatprep.subr.mxu0 0.0
    %2140 = vmatpush1.msra.mxu0 %v39
    %2141 = vmatprep.subr.mxu0 0.0
    %2142 = vmatpush2.msra.mxu0 0.0
    %2143 = vmatprep.subr.mxu0 0.0
    %2144 = vmatpush2.msra.mxu0 0.0
    %2145 = vmatprep.subr.mxu0 0.0
    %2146 = vmatpush2.msra.mxu0 0.0
    %2147 = vmatprep.subr.mxu0 0.0
    %2148 = vmatpush2.msra.mxu0 0.0
    %2149 = vmatprep.subr.mxu0 0.0
    %2150 = vmatpush2.msra.mxu0 0.0
    %2151 = vmatprep.subr.mxu0 0.0
    %2152 = vmatpush2.msra.mxu0 0.0
    %2153 = vmatprep.subr.mxu0 0.0
    %2154 = vmatpush2.msra.mxu0 0.0
    %2155 = vmatprep.subr.mxu0 0.0
    %2156 = vmatpush2.msra.mxu0 0.0
    %2157 = vmatprep.subr.mxu0 0.0
    %2158 = vmatpush2.msra.mxu0 0.0
    %2159 = vmatprep.subr.mxu0 0.0
    %2160 = vmatpush2.msra.mxu0 0.0
    %2161 = vmatprep.subr.mxu0 0.0
    %2162 = vmatpush2.msra.mxu0 0.0
    %2163 = vmatprep.subr.mxu0 0.0
    %2164 = vmatpush2.msra.mxu0 0.0
    %2165 = vmatprep.subr.mxu0 0.0
    %2166 = vmatpush2.msra.mxu0 0.0
    %2167 = vmatprep.subr.mxu0 0.0
    %2168 = vmatpush2.msra.mxu0 0.0
    %2169 = vmatprep.subr.mxu0 0.0
    %2170 = vmatpush2.msra.mxu0 0.0
    %2171 = vmatprep.subr.mxu0 0.0
    %2172 = vmatpush2.msra.mxu0 0.0
    %2173 = vmatprep.mubr.f32.mxu0 0.0
    %2174 = vmatmul.mubr.f32.gmra.mxu0 %v2029
    %v2175 = vpop.f32.mrf.mxu0
    %v2176 = vadd.f32 0.0, %v2175
    %v2177 = vpop.f32.mrf.mxu0
    %2178 = vmatprep.mubr.f32.mxu0 0.0
    %2179 = vmatmul.mubr.f32.gmra.mxu0 %v2032
    %v2180 = vpop.f32.mrf.mxu0
    %v2181 = vadd.f32 0.0, %v2180
    %v2182 = vpop.f32.mrf.mxu0
    %2183 = vdwg.mxu0
    %v2184 = vmax.f32 %v2101, %v2176
    %v2185 = vmax.f32 %v2106, %v2181
    %2186 = vmatprep.subr.mxu0 0.0
    %2187 = vmatpush1.msra.mxu0 0.0
    %2188 = vmatprep.subr.mxu0 0.0
    %2189 = vmatpush1.msra.mxu0 0.0
    %2190 = vmatprep.subr.mxu0 0.0
    %2191 = vmatpush1.msra.mxu0 0.0
    %2192 = vmatprep.subr.mxu0 0.0
    %2193 = vmatpush1.msra.mxu0 0.0
    %2194 = vmatprep.subr.mxu0 0.0
    %2195 = vmatpush1.msra.mxu0 0.0
    %2196 = vmatprep.subr.mxu0 0.0
    %2197 = vmatpush1.msra.mxu0 0.0
    %2198 = vmatprep.subr.mxu0 0.0
    %2199 = vmatpush1.msra.mxu0 0.0
    %2200 = vmatprep.subr.mxu0 0.0
    %2201 = vmatpush1.msra.mxu0 0.0
    %2202 = vmatprep.subr.mxu0 0.0
    %2203 = vmatpush1.msra.mxu0 0.0
    %2204 = vmatprep.subr.mxu0 0.0
    %2205 = vmatpush1.msra.mxu0 0.0
    %2206 = vmatprep.subr.mxu0 0.0
    %2207 = vmatpush1.msra.mxu0 0.0
    %2208 = vmatprep.subr.mxu0 0.0
    %2209 = vmatpush1.msra.mxu0 0.0
    %2210 = vmatprep.subr.mxu0 0.0
    %2211 = vmatpush1.msra.mxu0 0.0
    %2212 = vmatprep.subr.mxu0 0.0
    %2213 = vmatpush1.msra.mxu0 0.0
    %2214 = vmatprep.subr.mxu0 0.0
    %2215 = vmatpush1.msra.mxu0 %v47
    %2216 = vmatprep.subr.mxu0 0.0
    %2217 = vmatpush1.msra.mxu0 %v46
    %2218 = vmatprep.subr.mxu0 0.0
    %2219 = vmatpush2.msra.mxu0 0.0
    %2220 = vmatprep.subr.mxu0 0.0
    %2221 = vmatpush2.msra.mxu0 0.0
    %2222 = vmatprep.subr.mxu0 0.0
    %2223 = vmatpush2.msra.mxu0 0.0
    %2224 = vmatprep.subr.mxu0 0.0
    %2225 = vmatpush2.msra.mxu0 0.0
    %2226 = vmatprep.subr.mxu0 0.0
    %2227 = vmatpush2.msra.mxu0 0.0
    %2228 = vmatprep.subr.mxu0 0.0
    %2229 = vmatpush2.msra.mxu0 0.0
    %2230 = vmatprep.subr.mxu0 0.0
    %2231 = vmatpush2.msra.mxu0 0.0
    %2232 = vmatprep.subr.mxu0 0.0
    %2233 = vmatpush2.msra.mxu0 0.0
    %2234 = vmatprep.subr.mxu0 0.0
    %2235 = vmatpush2.msra.mxu0 0.0
    %2236 = vmatprep.subr.mxu0 0.0
    %2237 = vmatpush2.msra.mxu0 0.0
    %2238 = vmatprep.subr.mxu0 0.0
    %2239 = vmatpush2.msra.mxu0 0.0
    %2240 = vmatprep.subr.mxu0 0.0
    %2241 = vmatpush2.msra.mxu0 0.0
    %2242 = vmatprep.subr.mxu0 0.0
    %2243 = vmatpush2.msra.mxu0 0.0
    %2244 = vmatprep.subr.mxu0 0.0
    %2245 = vmatpush2.msra.mxu0 0.0
    %2246 = vmatprep.subr.mxu0 0.0
    %2247 = vmatpush2.msra.mxu0 0.0
    %2248 = vmatprep.subr.mxu0 0.0
    %2249 = vmatpush2.msra.mxu0 0.0
    %2250 = vmatprep.mubr.f32.mxu0 0.0
    %2251 = vmatmul.mubr.f32.gmra.mxu0 %v2029
    %v2252 = vpop.f32.mrf.mxu0
    %v2253 = vadd.f32 0.0, %v2252
    %v2254 = vpop.f32.mrf.mxu0
    %2255 = vmatprep.mubr.f32.mxu0 0.0
    %2256 = vmatmul.mubr.f32.gmra.mxu0 %v2032
    %v2257 = vpop.f32.mrf.mxu0
    %v2258 = vadd.f32 0.0, %v2257
    %v2259 = vpop.f32.mrf.mxu0
    %2260 = vdwg.mxu0
    %v2261 = vmax.f32 %v2184, %v2253
    %v2262 = vmax.f32 %v2185, %v2258
    %v2263 = vsel %vm286, %v2261, -inf
    %v2264 = vrot.slane %v2263, 4
    %v2265 = vmax.f32 %v2263, %v2264
    %v2266 = vrot.slane %v2265, 2
    %v2267 = vmax.f32 %v2265, %v2266
    %v2268 = vrot.slane %v2267, 1
    %v2269 = vmax.f32 %v2267, %v2268
    %v2270 = vsel %vm294, %v2261, -inf
    %v2271 = vrot.slane %v2270, 4
    %v2272 = vmax.f32 %v2270, %v2271
    %v2273 = vrot.slane %v2272, 2
    %v2274 = vmax.f32 %v2272, %v2273
    %v2275 = vrot.slane %v2274, 1
    %v2276 = vmax.f32 %v2274, %v2275
    %v2277 = vsel %vm302, %v2261, -inf
    %v2278 = vsel %vm304, %v2262, -inf
    %v2279 = vmax.f32 %v2277, %v2278
    %v2280 = vrot.slane %v2279, 4
    %v2281 = vmax.f32 %v2279, %v2280
    %v2282 = vrot.slane %v2281, 2
    %v2283 = vmax.f32 %v2281, %v2282
    %v2284 = vrot.slane %v2283, 1
    %v2285 = vmax.f32 %v2283, %v2284
    %v2286 = vsel %vm313, %v2262, -inf
    %v2287 = vrot.slane %v2286, 4
    %v2288 = vmax.f32 %v2286, %v2287
    %v2289 = vrot.slane %v2288, 2
    %v2290 = vmax.f32 %v2288, %v2289
    %v2291 = vrot.slane %v2290, 1
    %v2292 = vmax.f32 %v2290, %v2291
    %v2293 = vsel %vm321, %v2262, -inf
    %v2294 = vrot.slane %v2293, 4
    %v2295 = vmax.f32 %v2293, %v2294
    %v2296 = vrot.slane %v2295, 2
    %v2297 = vmax.f32 %v2295, %v2296
    %v2298 = vrot.slane %v2297, 1
    %v2299 = vmax.f32 %v2297, %v2298
    %v2300 = vsel %vm329, %v2269, %v2276
    %v2301 = vsel %vm331, %v2300, %v2285
    %v2302 = vsel %vm333, %v2301, %v2292
    %v2303 = vsel %vm335, %v2302, %v2299
    %s2304 = scalar_lea.vmem %s1, 56
    %2305 = vst.msk [vmem:[%s2304] sm:$0x1f] %vm337, %v2303
    // Predicated region
    $region10: #{tpu_custom_call.1} parent=1 // pred_check
      _
    $region11: #{tpu_custom_call.1} parent=1 // pred_check_branch
      %2307 = sbr.rel (0) target = $region13
    $region12: #{tpu_custom_call.1} parent=1 // pred_region
      _
    $region13: #{tpu_custom_call.1} parent=1 // pred_fallthru
      _
    // Predicated region
    $region14: #{tpu_custom_call.1} parent=1 // pred_check
      _
    $region15: #{tpu_custom_call.1} parent=1 // pred_check_branch
      %2309 = sbr.rel (0) target = $region17
    $region16: #{tpu_custom_call.1} parent=1 // pred_region
      _
    $region17: #{tpu_custom_call.1} parent=1 // pred_fallthru
      _
    %2310 = vsyncpa [#allocation3], 1

</llo_original>
